<compile_context>
chip_gen: v7x
topology: tpu7x:2x2x1
jax: 0.10.0
libtpu: 0.0.40
codegen_flags: <defaults>
</compile_context>

<pallas_src>
import math
from functools import partial

import jax
import jax.numpy as jnp
import numpy as np
from jax.experimental import pallas as pl
from jax.experimental.pallas import tpu as pltpu


# --------------------------- static packed layouts ---------------------------
# Every segment width is a multiple of 128 so static slices stay lane-aligned.

_VEC_SEGS = [
    ("ogb1", 512),                                   # ob1 | gb1
    ("og1", 256), ("obt1", 256), ("gg1", 256), ("gbt1", 256),
    ("ob2", 128), ("og2", 128), ("obt2", 128),
    ("gb2", 128), ("gg2", 128), ("gbt2", 128),
    ("pvb1", 512),                                   # pb1 | vb1
    ("pg1", 256), ("pbt1", 256), ("vg1", 256), ("vbt1", 256),
    ("pb2", 256), ("pg2", 256), ("pbt2", 256),
    ("vb2", 256), ("vg2", 256), ("vbt2", 256),
    ("headb", 128),                                  # amb in [0,A), vb3 in lane 127
]

_WB_SEGS = [
    ("ow2", 128), ("gw2", 128),
    ("pv1", 512),                                    # pw1 | vw1 (fused)
    ("pw2", 256), ("vw2", 256),
    ("amw", 128),                                    # action head, zero-padded
    ("vw3", 128),                                    # value head, real col at 127
]


def _offsets(segs):
    out, off = {}, 0
    for name, n in segs:
        out[name] = (off, n)
        off += n
    return out, off


_VEC_OFF, VEC_TOTAL = _offsets(_VEC_SEGS)   # VEC_TOTAL = 5504
_WB_OFF, WB_TOTAL = _offsets(_WB_SEGS)      # WB_TOTAL  = 1536


def _round_up(x, m):
    return ((x + m - 1) // m) * m


def _cdiv(a, b):
    return -(-a // b)


# ------------------------------- the kernel ---------------------------------

def _push_kernel(x_ref, w_in_ref, wb_ref, vec_ref, out_ref):
    f32 = jnp.float32
    bf16 = jnp.bfloat16

    def vec(name):                                   # (1, n) f32
        off, n = _VEC_OFF[name]
        return vec_ref[:, off:off + n]

    def wmat(name):                                  # (256, n) bf16
        off, n = _WB_OFF[name]
        return wb_ref[:, off:off + n]

    def mm(x, w):
        return jnp.dot(x.astype(bf16), w, preferred_element_type=f32)

    def ln_relu(y, gname, bname, eps=1e-5):
        # torch.nn.LayerNorm (biased variance) over last dim, then ReLU (f32).
        m = jnp.mean(y, axis=-1, keepdims=True)
        yc = y - m
        var = jnp.mean(yc * yc, axis=-1, keepdims=True)
        z = yc * jax.lax.rsqrt(var + eps) * vec(gname) + vec(bname)
        return jnp.maximum(z, 0.0)

    x = x_ref[...]                                   # (TB, KIN) bf16

    # Fused obs_net[0] + goal_net[0] via the block-diagonal first-layer weight.
    y01 = mm(x, w_in_ref[...]) + vec("ogb1")         # (TB, 512) f32
    h_o = ln_relu(y01[:, 0:256], "og1", "obt1")
    h_g = ln_relu(y01[:, 256:512], "gg1", "gbt1")

    obs_feat = ln_relu(mm(h_o, wmat("ow2")) + vec("ob2"), "og2", "obt2")     # (TB,128)
    goal_feat = ln_relu(mm(h_g, wmat("gw2")) + vec("gb2"), "gg2", "gbt2")    # (TB,128)

    # combined = [obs_feat | goal_feat] — lane-aligned 128+128 concat (cheap).
    comb = jnp.concatenate([obs_feat.astype(bf16), goal_feat.astype(bf16)], axis=-1)

    # Fused policy_net[0] + value_net[0]: one K=256, N=512 MXU matmul.
    y_pv = mm(comb, wmat("pv1")) + vec("pvb1")       # (TB, 512) f32
    hp = ln_relu(y_pv[:, 0:256], "pg1", "pbt1")
    hv = ln_relu(y_pv[:, 256:512], "vg1", "vbt1")

    pol = ln_relu(mm(hp, wmat("pw2")) + vec("pb2"), "pg2", "pbt2")           # (TB,256)
    vh = ln_relu(mm(hv, wmat("vw2")) + vec("vb2"), "vg2", "vbt2")            # (TB,256)

    # Single lane-dense (TB,128) store: action mean in lanes [0, A), value in
    # lane 127.  Both head weights are zero-padded so the sum is exact.
    out_ref[...] = mm(pol, wmat("amw")) + mm(vh, wmat("vw3")) + vec("headb")


# ------------------------------ wrapper + init -------------------------------

def _linear_params(key, fan_in, fan_out):
    """Torch-default-style init: U(-1/sqrt(fan_in), 1/sqrt(fan_in))."""
    kw, kb = jax.random.split(key)
    bound = 1.0 / math.sqrt(fan_in)
    w = jax.random.uniform(kw, (fan_in, fan_out), jnp.float32, -bound, bound)
    b = jax.random.uniform(kb, (1, fan_out), jnp.float32, -bound, bound)
    return w, b


def _ln_params(n):
    return jnp.ones((1, n), jnp.float32), jnp.zeros((1, n), jnp.float32)


def init_push_network_params(key, obs_dim, goal_dim, action_dim):
    keys = jax.random.split(key, 16)
    p = []
    w, b = _linear_params(keys[0], obs_dim, 256); g, bt = _ln_params(256); p += [w, b, g, bt]
    w, b = _linear_params(keys[1], 256, 128);     g, bt = _ln_params(128); p += [w, b, g, bt]
    w, b = _linear_params(keys[2], goal_dim * 2, 256); g, bt = _ln_params(256); p += [w, b, g, bt]
    w, b = _linear_params(keys[3], 256, 128);     g, bt = _ln_params(128); p += [w, b, g, bt]
    w, b = _linear_params(keys[4], 256, 256);     g, bt = _ln_params(256); p += [w, b, g, bt]
    w, b = _linear_params(keys[5], 256, 256);     g, bt = _ln_params(256); p += [w, b, g, bt]
    w, b = _linear_params(keys[6], 256, action_dim); p += [w, b, jnp.zeros((1, action_dim), jnp.float32)]
    w, b = _linear_params(keys[7], 256, 256);     g, bt = _ln_params(256); p += [w, b, g, bt]
    w, b = _linear_params(keys[8], 256, 256);     g, bt = _ln_params(256); p += [w, b, g, bt]
    w, b = _linear_params(keys[9], 256, 1);       p += [w, b]
    return p


def pack_params(params):
    (ow1, ob1, og1, obt1, ow2, ob2, og2, obt2,
     gw1, gb1, gg1, gbt1, gw2, gb2, gg2, gbt2,
     pw1, pb1, pg1, pbt1, pw2, pb2, pg2, pbt2,
     amw, amb, logstd,
     vw1, vb1, vg1, vbt1, vw2, vb2, vg2, vbt2, vw3, vb3) = params

    obs_dim = ow1.shape[0]
    goal2 = gw1.shape[0]
    din = obs_dim + goal2
    kin = _round_up(din, 128)
    action_dim = amw.shape[1]
    assert action_dim < 127, "value lane (127) must not collide with action lanes"

    # Block-diagonal first-layer weight: obs rows -> cols 0:256, goal -> 256:512.
    w_in = jnp.zeros((kin, 512), jnp.float32)
    w_in = w_in.at[:obs_dim, 0:256].set(ow1)
    w_in = w_in.at[obs_dim:din, 256:512].set(gw1)
    w_in = w_in.astype(jnp.bfloat16)

    # Heads, packed into one 128-lane output slab: action cols 0:A, value at 127.
    amw_p = jnp.zeros((256, 128), jnp.float32).at[:, :action_dim].set(amw)
    vw3_p = jnp.zeros((256, 128), jnp.float32).at[:, 127:128].set(vw3)
    headb = (jnp.zeros((1, 128), jnp.float32)
             .at[:, :action_dim].set(amb)
             .at[:, 127:128].set(vb3))

    vec_parts = {
        "ogb1": jnp.concatenate([ob1, gb1], axis=1),
        "og1": og1, "obt1": obt1, "gg1": gg1, "gbt1": gbt1,
        "ob2": ob2, "og2": og2, "obt2": obt2,
        "gb2": gb2, "gg2": gg2, "gbt2": gbt2,
        "pvb1": jnp.concatenate([pb1, vb1], axis=1),
        "pg1": pg1, "pbt1": pbt1, "vg1": vg1, "vbt1": vbt1,
        "pb2": pb2, "pg2": pg2, "pbt2": pbt2,
        "vb2": vb2, "vg2": vg2, "vbt2": vbt2,
        "headb": headb,
    }
    for name, n in _VEC_SEGS:
        assert vec_parts[name].shape == (1, n), (name, vec_parts[name].shape)
    vec = jnp.concatenate([vec_parts[n] for n, _ in _VEC_SEGS], axis=1).astype(jnp.float32)

    wb_parts = {
        "ow2": ow2, "gw2": gw2,
        "pv1": jnp.concatenate([pw1, vw1], axis=1),
        "pw2": pw2, "vw2": vw2,
        "amw": amw_p, "vw3": vw3_p,
    }
    for name, n in _WB_SEGS:
        assert wb_parts[name].shape == (256, n), (name, wb_parts[name].shape)
    wb = jnp.concatenate([wb_parts[n] for n, _ in _WB_SEGS], axis=1).astype(jnp.bfloat16)

    std_row = jnp.exp(logstd).astype(jnp.float32)
    return w_in, wb, vec, std_row, action_dim, kin


def _cost_estimate(bp, kin):
    per_row_macs = (kin * 512            # fused obs/goal first layers
                    + 2 * 256 * 128      # ow2, gw2
                    + 256 * 512          # fused pw1|vw1
                    + 2 * 256 * 256      # pw2, vw2
                    + 2 * 256 * 128)     # padded heads
    flops = 2 * bp * per_row_macs
    transcendentals = 8 * bp             # one rsqrt per LayerNorm row
    bytes_accessed = (bp * kin * 2                  # bf16 input
                      + kin * 512 * 2               # w_in (bf16)
                      + 256 * WB_TOTAL * 2          # packed weights (bf16)
                      + VEC_TOTAL * 4               # packed vectors (f32)
                      + bp * 128 * 4)               # output slab (f32)
    return pl.CostEstimate(flops=flops, transcendentals=transcendentals,
                           bytes_accessed=bytes_accessed)


@partial(jax.jit, static_argnames=("block_b",))
def push_network_forward(params, observation, achieved_goal, desired_goal, *, block_b=1024):
    """Returns (action_mean, action_std, value) — same semantics as the torch module."""
    w_in, wb, vec, std_row, action_dim, kin = pack_params(params)

    batch = observation.shape[0]
    din = observation.shape[1] + achieved_goal.shape[1] + desired_goal.shape[1]

    # Batch tiling: low padding waste, and >= 2 grid steps for non-tiny batches
    # so dimension_semantics=("parallel",) keeps both v7x TensorCores busy.
    nblk = max(1, _cdiv(batch, block_b))
    if _round_up(batch, 8) >= 16:
        nblk = max(nblk, 2)
    tb = _round_up(_cdiv(batch, nblk), 8)
    bp = tb * nblk

    x = jnp.concatenate([observation, achieved_goal, desired_goal], axis=-1)
    x = jnp.pad(x, ((0, bp - batch), (0, kin - din))).astype(jnp.bfloat16)

    resident = lambda i: (0, 0)   # parameters stay resident in VMEM across the grid

    out = pl.pallas_call(
        _push_kernel,
        out_shape=jax.ShapeDtypeStruct((bp, 128), jnp.float32),
        grid_spec=pltpu.PrefetchScalarGridSpec(
            num_scalar_prefetch=0,
            grid=(nblk,),
            in_specs=[
                pl.BlockSpec((tb, kin), lambda i: (i, 0)),
                pl.BlockSpec((kin, 512), resident),
                pl.BlockSpec((256, WB_TOTAL), resident),
                pl.BlockSpec((1, VEC_TOTAL), resident),
            ],
            out_specs=pl.BlockSpec((tb, 128), lambda i: (i, 0)),
        ),
        compiler_params=pltpu.CompilerParams(
            dimension_semantics=("parallel",),
            vmem_limit_bytes=32 * 1024 * 1024,
        ),
        cost_estimate=_cost_estimate(bp, kin),
    )(x, w_in, wb, vec)

    action_mean = out[:batch, :action_dim]
    value = out[:batch, 127:128]
    action_std = jnp.broadcast_to(std_row, (batch, action_dim))
    return action_mean, action_std, value


# ----------------------------- pure-JAX reference ----------------------------

def _ref_forward(params, observation, achieved_goal, desired_goal):
    bf16 = jnp.bfloat16

    def lin(x, w, b):
        return jnp.dot(x.astype(bf16), w.astype(bf16),
                       preferred_element_type=jnp.float32) + b

    def ln_relu(x, g, bt, eps=1e-5):
        m = jnp.mean(x, axis=-1, keepdims=True)
        v = jnp.mean((x - m) ** 2, axis=-1, keepdims=True)
        return jnp.maximum((x - m) * jax.lax.rsqrt(v + eps) * g + bt, 0.0)

    (ow1, ob1, og1, obt1, ow2, ob2, og2, obt2,
     gw1, gb1, gg1, gbt1, gw2, gb2, gg2, gbt2,
     pw1, pb1, pg1, pbt1, pw2, pb2, pg2, pbt2,
     amw, amb, logstd,
     vw1, vb1, vg1, vbt1, vw2, vb2, vg2, vbt2, vw3, vb3) = params

    obs_feat = ln_relu(lin(ln_relu(lin(observation, ow1, ob1), og1, obt1), ow2, ob2), og2, obt2)
    goal_in = jnp.concatenate([achieved_goal, desired_goal], axis=-1)
    goal_feat = ln_relu(lin(ln_relu(lin(goal_in, gw1, gb1), gg1, gbt1), gw2, gb2), gg2, gbt2)
    comb = jnp.concatenate([obs_feat, goal_feat], axis=-1)
    pol = ln_relu(lin(ln_relu(lin(comb, pw1, pb1), pg1, pbt1), pw2, pb2), pg2, pbt2)
    a_mean = lin(pol, amw, amb)
    a_std = jnp.broadcast_to(jnp.exp(logstd), a_mean.shape)
    v = ln_relu(lin(ln_relu(lin(comb, vw1, vb1), vg1, vbt1), vw2, vb2), vg2, vbt2)
    value = lin(v, vw3, vb3)
    return a_mean, a_std, value


# ---------------------------------- main -------------------------------------

if __name__ == "__main__":
    OBS_DIM, GOAL_DIM, ACTION_DIM, BATCH = 16, 4, 4, 8

    key = jax.random.PRNGKey(0)
    kp, ko, ka, kd = jax.random.split(key, 4)

    params = init_push_network_params(kp, OBS_DIM, GOAL_DIM, ACTION_DIM)
    observation = jax.random.normal(ko, (BATCH, OBS_DIM), jnp.float32)
    achieved_goal = jax.random.normal(ka, (BATCH, GOAL_DIM), jnp.float32)
    desired_goal = jax.random.normal(kd, (BATCH, GOAL_DIM), jnp.float32)

    a_mean, a_std, value = jax.block_until_ready(
        push_network_forward(params, observation, achieved_goal, desired_goal)
    )

    # Reference uses the same bf16 matmul-operand casts (f32 accumulate, f32 LN).
    r_mean, r_std, r_value = _ref_forward(params, observation, achieved_goal, desired_goal)
    np.testing.assert_allclose(np.asarray(a_mean), np.asarray(r_mean), rtol=5e-3, atol=5e-3)
    np.testing.assert_allclose(np.asarray(a_std), np.asarray(r_std), rtol=5e-3, atol=5e-3)
    np.testing.assert_allclose(np.asarray(value), np.asarray(r_value), rtol=5e-3, atol=5e-3)

    assert a_mean.shape == (BATCH, ACTION_DIM)
    assert a_std.shape == (BATCH, ACTION_DIM)
    assert value.shape == (BATCH, 1)

    print("KERNEL_OK")
</pallas_src>

<mosaic_0001>
module attributes {stable_mosaic.version = 11 : i64} {
  func.func @_push_kernel(%arg0: i32, %arg1: memref<8x128xbf16, #tpu.memory_space<vmem>>, %arg2: memref<128x512xbf16, #tpu.memory_space<vmem>>, %arg3: memref<256x1536xbf16, #tpu.memory_space<vmem>>, %arg4: memref<1x5504xf32, #tpu.memory_space<vmem>>, %arg5: memref<8x128xf32, #tpu.memory_space<vmem>>) attributes {dimension_semantics = [#tpu.dimension_semantics<parallel>], iteration_bounds = array<i64: 1>, scalar_prefetch = 0 : i64, scratch_operands = 0 : i64, tpu.core_type = #tpu.core_type<tc>, window_params = [{transform_indices = @transform_0, window_bounds = array<i64: 8, 128>}, {pipeline_mode = #tpu.pipeline_mode<synchronous>, transform_indices = @transform_1, window_bounds = array<i64: 128, 512>}, {pipeline_mode = #tpu.pipeline_mode<synchronous>, transform_indices = @transform_2, window_bounds = array<i64: 256, 1536>}, {pipeline_mode = #tpu.pipeline_mode<synchronous>, transform_indices = @transform_3, window_bounds = array<i64: 1, 5504>}, {transform_indices = @transform_4, window_bounds = array<i64: 8, 128>}]} {
    %c0 = arith.constant 0 : index
    %c0_0 = arith.constant 0 : index
    %0 = vector.load %arg1[%c0, %c0_0] : memref<8x128xbf16, #tpu.memory_space<vmem>>, vector<8x128xbf16>
    %c0_1 = arith.constant 0 : index
    %c0_2 = arith.constant 0 : index
    %1 = vector.load %arg2[%c0_1, %c0_2] : memref<128x512xbf16, #tpu.memory_space<vmem>>, vector<128x512xbf16>
    %cst = arith.constant dense<0.000000e+00> : vector<8x512xf32>
    %2 = tpu.matmul %0, %1, %cst {dimension_numbers = #tpu.dot_dimension_numbers<[1], [0], [0], [1], [0, 0, 1, 1], [], []>} : vector<8x128xbf16>, vector<128x512xbf16>, vector<8x512xf32> -> vector<8x512xf32>
    %c0_3 = arith.constant 0 : index
    %c0_4 = arith.constant 0 : index
    %3 = vector.load %arg4[%c0_3, %c0_4] : memref<1x5504xf32, #tpu.memory_space<vmem>>, vector<1x512xf32>
    %4 = vector.broadcast %3 : vector<1x512xf32> to vector<8x512xf32>
    %5 = arith.addf %2, %4 : vector<8x512xf32>
    %6 = vector.extract_strided_slice %5 {offsets = [0, 0], sizes = [8, 256], strides = [1, 1]} : vector<8x512xf32> to vector<8x256xf32>
    %cst_5 = arith.constant dense<0.000000e+00> : vector<8xf32>
    %7 = vector.multi_reduction <add>, %6, %cst_5 [1] : vector<8x256xf32> to vector<8xf32>
    %8 = vector.shape_cast %7 : vector<8xf32> to vector<8x1xf32>
    %cst_6 = arith.constant 2.560000e+02 : f32
    %9 = vector.broadcast %cst_6 : f32 to vector<8x1xf32>
    %10 = arith.divf %8, %9 : vector<8x1xf32>
    %11 = vector.broadcast %10 : vector<8x1xf32> to vector<8x256xf32>
    %12 = arith.subf %6, %11 : vector<8x256xf32>
    %13 = arith.mulf %12, %12 : vector<8x256xf32>
    %cst_7 = arith.constant dense<0.000000e+00> : vector<8xf32>
    %14 = vector.multi_reduction <add>, %13, %cst_7 [1] : vector<8x256xf32> to vector<8xf32>
    %15 = vector.shape_cast %14 : vector<8xf32> to vector<8x1xf32>
    %cst_8 = arith.constant 2.560000e+02 : f32
    %16 = vector.broadcast %cst_8 : f32 to vector<8x1xf32>
    %17 = arith.divf %15, %16 : vector<8x1xf32>
    %cst_9 = arith.constant 9.99999974E-6 : f32
    %18 = vector.broadcast %cst_9 : f32 to vector<8x1xf32>
    %19 = arith.addf %17, %18 : vector<8x1xf32>
    %20 = math.rsqrt %19 : vector<8x1xf32>
    %21 = vector.broadcast %20 : vector<8x1xf32> to vector<8x256xf32>
    %22 = arith.mulf %12, %21 : vector<8x256xf32>
    %c0_10 = arith.constant 0 : index
    %c512 = arith.constant 512 : index
    %23 = vector.load %arg4[%c0_10, %c512] : memref<1x5504xf32, #tpu.memory_space<vmem>>, vector<1x256xf32>
    %24 = vector.broadcast %23 : vector<1x256xf32> to vector<8x256xf32>
    %25 = arith.mulf %22, %24 : vector<8x256xf32>
    %c0_11 = arith.constant 0 : index
    %c768 = arith.constant 768 : index
    %26 = vector.load %arg4[%c0_11, %c768] : memref<1x5504xf32, #tpu.memory_space<vmem>>, vector<1x256xf32>
    %27 = vector.broadcast %26 : vector<1x256xf32> to vector<8x256xf32>
    %28 = arith.addf %25, %27 : vector<8x256xf32>
    %cst_12 = arith.constant 0.000000e+00 : f32
    %29 = vector.broadcast %cst_12 : f32 to vector<8x256xf32>
    %30 = arith.maximumf %28, %29 : vector<8x256xf32>
    %31 = vector.extract_strided_slice %5 {offsets = [0, 256], sizes = [8, 256], strides = [1, 1]} : vector<8x512xf32> to vector<8x256xf32>
    %cst_13 = arith.constant dense<0.000000e+00> : vector<8xf32>
    %32 = vector.multi_reduction <add>, %31, %cst_13 [1] : vector<8x256xf32> to vector<8xf32>
    %33 = vector.shape_cast %32 : vector<8xf32> to vector<8x1xf32>
    %cst_14 = arith.constant 2.560000e+02 : f32
    %34 = vector.broadcast %cst_14 : f32 to vector<8x1xf32>
    %35 = arith.divf %33, %34 : vector<8x1xf32>
    %36 = vector.broadcast %35 : vector<8x1xf32> to vector<8x256xf32>
    %37 = arith.subf %31, %36 : vector<8x256xf32>
    %38 = arith.mulf %37, %37 : vector<8x256xf32>
    %cst_15 = arith.constant dense<0.000000e+00> : vector<8xf32>
    %39 = vector.multi_reduction <add>, %38, %cst_15 [1] : vector<8x256xf32> to vector<8xf32>
    %40 = vector.shape_cast %39 : vector<8xf32> to vector<8x1xf32>
    %cst_16 = arith.constant 2.560000e+02 : f32
    %41 = vector.broadcast %cst_16 : f32 to vector<8x1xf32>
    %42 = arith.divf %40, %41 : vector<8x1xf32>
    %cst_17 = arith.constant 9.99999974E-6 : f32
    %43 = vector.broadcast %cst_17 : f32 to vector<8x1xf32>
    %44 = arith.addf %42, %43 : vector<8x1xf32>
    %45 = math.rsqrt %44 : vector<8x1xf32>
    %46 = vector.broadcast %45 : vector<8x1xf32> to vector<8x256xf32>
    %47 = arith.mulf %37, %46 : vector<8x256xf32>
    %c0_18 = arith.constant 0 : index
    %c1024 = arith.constant 1024 : index
    %48 = vector.load %arg4[%c0_18, %c1024] : memref<1x5504xf32, #tpu.memory_space<vmem>>, vector<1x256xf32>
    %49 = vector.broadcast %48 : vector<1x256xf32> to vector<8x256xf32>
    %50 = arith.mulf %47, %49 : vector<8x256xf32>
    %c0_19 = arith.constant 0 : index
    %c1280 = arith.constant 1280 : index
    %51 = vector.load %arg4[%c0_19, %c1280] : memref<1x5504xf32, #tpu.memory_space<vmem>>, vector<1x256xf32>
    %52 = vector.broadcast %51 : vector<1x256xf32> to vector<8x256xf32>
    %53 = arith.addf %50, %52 : vector<8x256xf32>
    %cst_20 = arith.constant 0.000000e+00 : f32
    %54 = vector.broadcast %cst_20 : f32 to vector<8x256xf32>
    %55 = arith.maximumf %53, %54 : vector<8x256xf32>
    %c0_21 = arith.constant 0 : index
    %c0_22 = arith.constant 0 : index
    %56 = vector.load %arg3[%c0_21, %c0_22] : memref<256x1536xbf16, #tpu.memory_space<vmem>>, vector<256x128xbf16>
    %57 = arith.truncf %30 : vector<8x256xf32> to vector<8x256xbf16>
    %cst_23 = arith.constant dense<0.000000e+00> : vector<8x128xf32>
    %58 = tpu.matmul %57, %56, %cst_23 {dimension_numbers = #tpu.dot_dimension_numbers<[1], [0], [0], [1], [0, 0, 1, 1], [], []>} : vector<8x256xbf16>, vector<256x128xbf16>, vector<8x128xf32> -> vector<8x128xf32>
    %c0_24 = arith.constant 0 : index
    %c1536 = arith.constant 1536 : index
    %59 = vector.load %arg4[%c0_24, %c1536] : memref<1x5504xf32, #tpu.memory_space<vmem>>, vector<1x128xf32>
    %60 = vector.broadcast %59 : vector<1x128xf32> to vector<8x128xf32>
    %61 = arith.addf %58, %60 : vector<8x128xf32>
    %cst_25 = arith.constant dense<0.000000e+00> : vector<8xf32>
    %62 = vector.multi_reduction <add>, %61, %cst_25 [1] : vector<8x128xf32> to vector<8xf32>
    %63 = vector.shape_cast %62 : vector<8xf32> to vector<8x1xf32>
    %cst_26 = arith.constant 1.280000e+02 : f32
    %64 = vector.broadcast %cst_26 : f32 to vector<8x1xf32>
    %65 = arith.divf %63, %64 : vector<8x1xf32>
    %66 = vector.broadcast %65 : vector<8x1xf32> to vector<8x128xf32>
    %67 = arith.subf %61, %66 : vector<8x128xf32>
    %68 = arith.mulf %67, %67 : vector<8x128xf32>
    %cst_27 = arith.constant dense<0.000000e+00> : vector<8xf32>
    %69 = vector.multi_reduction <add>, %68, %cst_27 [1] : vector<8x128xf32> to vector<8xf32>
    %70 = vector.shape_cast %69 : vector<8xf32> to vector<8x1xf32>
    %cst_28 = arith.constant 1.280000e+02 : f32
    %71 = vector.broadcast %cst_28 : f32 to vector<8x1xf32>
    %72 = arith.divf %70, %71 : vector<8x1xf32>
    %cst_29 = arith.constant 9.99999974E-6 : f32
    %73 = vector.broadcast %cst_29 : f32 to vector<8x1xf32>
    %74 = arith.addf %72, %73 : vector<8x1xf32>
    %75 = math.rsqrt %74 : vector<8x1xf32>
    %76 = vector.broadcast %75 : vector<8x1xf32> to vector<8x128xf32>
    %77 = arith.mulf %67, %76 : vector<8x128xf32>
    %c0_30 = arith.constant 0 : index
    %c1664 = arith.constant 1664 : index
    %78 = vector.load %arg4[%c0_30, %c1664] : memref<1x5504xf32, #tpu.memory_space<vmem>>, vector<1x128xf32>
    %79 = vector.broadcast %78 : vector<1x128xf32> to vector<8x128xf32>
    %80 = arith.mulf %77, %79 : vector<8x128xf32>
    %c0_31 = arith.constant 0 : index
    %c1792 = arith.constant 1792 : index
    %81 = vector.load %arg4[%c0_31, %c1792] : memref<1x5504xf32, #tpu.memory_space<vmem>>, vector<1x128xf32>
    %82 = vector.broadcast %81 : vector<1x128xf32> to vector<8x128xf32>
    %83 = arith.addf %80, %82 : vector<8x128xf32>
    %cst_32 = arith.constant 0.000000e+00 : f32
    %84 = vector.broadcast %cst_32 : f32 to vector<8x128xf32>
    %85 = arith.maximumf %83, %84 : vector<8x128xf32>
    %c0_33 = arith.constant 0 : index
    %c128 = arith.constant 128 : index
    %86 = vector.load %arg3[%c0_33, %c128] : memref<256x1536xbf16, #tpu.memory_space<vmem>>, vector<256x128xbf16>
    %87 = arith.truncf %55 : vector<8x256xf32> to vector<8x256xbf16>
    %cst_34 = arith.constant dense<0.000000e+00> : vector<8x128xf32>
    %88 = tpu.matmul %87, %86, %cst_34 {dimension_numbers = #tpu.dot_dimension_numbers<[1], [0], [0], [1], [0, 0, 1, 1], [], []>} : vector<8x256xbf16>, vector<256x128xbf16>, vector<8x128xf32> -> vector<8x128xf32>
    %c0_35 = arith.constant 0 : index
    %c1920 = arith.constant 1920 : index
    %89 = vector.load %arg4[%c0_35, %c1920] : memref<1x5504xf32, #tpu.memory_space<vmem>>, vector<1x128xf32>
    %90 = vector.broadcast %89 : vector<1x128xf32> to vector<8x128xf32>
    %91 = arith.addf %88, %90 : vector<8x128xf32>
    %cst_36 = arith.constant dense<0.000000e+00> : vector<8xf32>
    %92 = vector.multi_reduction <add>, %91, %cst_36 [1] : vector<8x128xf32> to vector<8xf32>
    %93 = vector.shape_cast %92 : vector<8xf32> to vector<8x1xf32>
    %cst_37 = arith.constant 1.280000e+02 : f32
    %94 = vector.broadcast %cst_37 : f32 to vector<8x1xf32>
    %95 = arith.divf %93, %94 : vector<8x1xf32>
    %96 = vector.broadcast %95 : vector<8x1xf32> to vector<8x128xf32>
    %97 = arith.subf %91, %96 : vector<8x128xf32>
    %98 = arith.mulf %97, %97 : vector<8x128xf32>
    %cst_38 = arith.constant dense<0.000000e+00> : vector<8xf32>
    %99 = vector.multi_reduction <add>, %98, %cst_38 [1] : vector<8x128xf32> to vector<8xf32>
    %100 = vector.shape_cast %99 : vector<8xf32> to vector<8x1xf32>
    %cst_39 = arith.constant 1.280000e+02 : f32
    %101 = vector.broadcast %cst_39 : f32 to vector<8x1xf32>
    %102 = arith.divf %100, %101 : vector<8x1xf32>
    %cst_40 = arith.constant 9.99999974E-6 : f32
    %103 = vector.broadcast %cst_40 : f32 to vector<8x1xf32>
    %104 = arith.addf %102, %103 : vector<8x1xf32>
    %105 = math.rsqrt %104 : vector<8x1xf32>
    %106 = vector.broadcast %105 : vector<8x1xf32> to vector<8x128xf32>
    %107 = arith.mulf %97, %106 : vector<8x128xf32>
    %c0_41 = arith.constant 0 : index
    %c2048 = arith.constant 2048 : index
    %108 = vector.load %arg4[%c0_41, %c2048] : memref<1x5504xf32, #tpu.memory_space<vmem>>, vector<1x128xf32>
    %109 = vector.broadcast %108 : vector<1x128xf32> to vector<8x128xf32>
    %110 = arith.mulf %107, %109 : vector<8x128xf32>
    %c0_42 = arith.constant 0 : index
    %c2176 = arith.constant 2176 : index
    %111 = vector.load %arg4[%c0_42, %c2176] : memref<1x5504xf32, #tpu.memory_space<vmem>>, vector<1x128xf32>
    %112 = vector.broadcast %111 : vector<1x128xf32> to vector<8x128xf32>
    %113 = arith.addf %110, %112 : vector<8x128xf32>
    %cst_43 = arith.constant 0.000000e+00 : f32
    %114 = vector.broadcast %cst_43 : f32 to vector<8x128xf32>
    %115 = arith.maximumf %113, %114 : vector<8x128xf32>
    %116 = arith.truncf %85 : vector<8x128xf32> to vector<8x128xbf16>
    %117 = arith.truncf %115 : vector<8x128xf32> to vector<8x128xbf16>
    %118 = tpu.concatenate %116, %117 in 1 : vector<8x128xbf16>, vector<8x128xbf16> -> vector<8x256xbf16>
    %c0_44 = arith.constant 0 : index
    %c256 = arith.constant 256 : index
    %119 = vector.load %arg3[%c0_44, %c256] : memref<256x1536xbf16, #tpu.memory_space<vmem>>, vector<256x512xbf16>
    %cst_45 = arith.constant dense<0.000000e+00> : vector<8x512xf32>
    %120 = tpu.matmul %118, %119, %cst_45 {dimension_numbers = #tpu.dot_dimension_numbers<[1], [0], [0], [1], [0, 0, 1, 1], [], []>} : vector<8x256xbf16>, vector<256x512xbf16>, vector<8x512xf32> -> vector<8x512xf32>
    %c0_46 = arith.constant 0 : index
    %c2304 = arith.constant 2304 : index
    %121 = vector.load %arg4[%c0_46, %c2304] : memref<1x5504xf32, #tpu.memory_space<vmem>>, vector<1x512xf32>
    %122 = vector.broadcast %121 : vector<1x512xf32> to vector<8x512xf32>
    %123 = arith.addf %120, %122 : vector<8x512xf32>
    %124 = vector.extract_strided_slice %123 {offsets = [0, 0], sizes = [8, 256], strides = [1, 1]} : vector<8x512xf32> to vector<8x256xf32>
    %cst_47 = arith.constant dense<0.000000e+00> : vector<8xf32>
    %125 = vector.multi_reduction <add>, %124, %cst_47 [1] : vector<8x256xf32> to vector<8xf32>
    %126 = vector.shape_cast %125 : vector<8xf32> to vector<8x1xf32>
    %cst_48 = arith.constant 2.560000e+02 : f32
    %127 = vector.broadcast %cst_48 : f32 to vector<8x1xf32>
    %128 = arith.divf %126, %127 : vector<8x1xf32>
    %129 = vector.broadcast %128 : vector<8x1xf32> to vector<8x256xf32>
    %130 = arith.subf %124, %129 : vector<8x256xf32>
    %131 = arith.mulf %130, %130 : vector<8x256xf32>
    %cst_49 = arith.constant dense<0.000000e+00> : vector<8xf32>
    %132 = vector.multi_reduction <add>, %131, %cst_49 [1] : vector<8x256xf32> to vector<8xf32>
    %133 = vector.shape_cast %132 : vector<8xf32> to vector<8x1xf32>
    %cst_50 = arith.constant 2.560000e+02 : f32
    %134 = vector.broadcast %cst_50 : f32 to vector<8x1xf32>
    %135 = arith.divf %133, %134 : vector<8x1xf32>
    %cst_51 = arith.constant 9.99999974E-6 : f32
    %136 = vector.broadcast %cst_51 : f32 to vector<8x1xf32>
    %137 = arith.addf %135, %136 : vector<8x1xf32>
    %138 = math.rsqrt %137 : vector<8x1xf32>
    %139 = vector.broadcast %138 : vector<8x1xf32> to vector<8x256xf32>
    %140 = arith.mulf %130, %139 : vector<8x256xf32>
    %c0_52 = arith.constant 0 : index
    %c2816 = arith.constant 2816 : index
    %141 = vector.load %arg4[%c0_52, %c2816] : memref<1x5504xf32, #tpu.memory_space<vmem>>, vector<1x256xf32>
    %142 = vector.broadcast %141 : vector<1x256xf32> to vector<8x256xf32>
    %143 = arith.mulf %140, %142 : vector<8x256xf32>
    %c0_53 = arith.constant 0 : index
    %c3072 = arith.constant 3072 : index
    %144 = vector.load %arg4[%c0_53, %c3072] : memref<1x5504xf32, #tpu.memory_space<vmem>>, vector<1x256xf32>
    %145 = vector.broadcast %144 : vector<1x256xf32> to vector<8x256xf32>
    %146 = arith.addf %143, %145 : vector<8x256xf32>
    %cst_54 = arith.constant 0.000000e+00 : f32
    %147 = vector.broadcast %cst_54 : f32 to vector<8x256xf32>
    %148 = arith.maximumf %146, %147 : vector<8x256xf32>
    %149 = vector.extract_strided_slice %123 {offsets = [0, 256], sizes = [8, 256], strides = [1, 1]} : vector<8x512xf32> to vector<8x256xf32>
    %cst_55 = arith.constant dense<0.000000e+00> : vector<8xf32>
    %150 = vector.multi_reduction <add>, %149, %cst_55 [1] : vector<8x256xf32> to vector<8xf32>
    %151 = vector.shape_cast %150 : vector<8xf32> to vector<8x1xf32>
    %cst_56 = arith.constant 2.560000e+02 : f32
    %152 = vector.broadcast %cst_56 : f32 to vector<8x1xf32>
    %153 = arith.divf %151, %152 : vector<8x1xf32>
    %154 = vector.broadcast %153 : vector<8x1xf32> to vector<8x256xf32>
    %155 = arith.subf %149, %154 : vector<8x256xf32>
    %156 = arith.mulf %155, %155 : vector<8x256xf32>
    %cst_57 = arith.constant dense<0.000000e+00> : vector<8xf32>
    %157 = vector.multi_reduction <add>, %156, %cst_57 [1] : vector<8x256xf32> to vector<8xf32>
    %158 = vector.shape_cast %157 : vector<8xf32> to vector<8x1xf32>
    %cst_58 = arith.constant 2.560000e+02 : f32
    %159 = vector.broadcast %cst_58 : f32 to vector<8x1xf32>
    %160 = arith.divf %158, %159 : vector<8x1xf32>
    %cst_59 = arith.constant 9.99999974E-6 : f32
    %161 = vector.broadcast %cst_59 : f32 to vector<8x1xf32>
    %162 = arith.addf %160, %161 : vector<8x1xf32>
    %163 = math.rsqrt %162 : vector<8x1xf32>
    %164 = vector.broadcast %163 : vector<8x1xf32> to vector<8x256xf32>
    %165 = arith.mulf %155, %164 : vector<8x256xf32>
    %c0_60 = arith.constant 0 : index
    %c3328 = arith.constant 3328 : index
    %166 = vector.load %arg4[%c0_60, %c3328] : memref<1x5504xf32, #tpu.memory_space<vmem>>, vector<1x256xf32>
    %167 = vector.broadcast %166 : vector<1x256xf32> to vector<8x256xf32>
    %168 = arith.mulf %165, %167 : vector<8x256xf32>
    %c0_61 = arith.constant 0 : index
    %c3584 = arith.constant 3584 : index
    %169 = vector.load %arg4[%c0_61, %c3584] : memref<1x5504xf32, #tpu.memory_space<vmem>>, vector<1x256xf32>
    %170 = vector.broadcast %169 : vector<1x256xf32> to vector<8x256xf32>
    %171 = arith.addf %168, %170 : vector<8x256xf32>
    %cst_62 = arith.constant 0.000000e+00 : f32
    %172 = vector.broadcast %cst_62 : f32 to vector<8x256xf32>
    %173 = arith.maximumf %171, %172 : vector<8x256xf32>
    %c0_63 = arith.constant 0 : index
    %c768_64 = arith.constant 768 : index
    %174 = vector.load %arg3[%c0_63, %c768_64] : memref<256x1536xbf16, #tpu.memory_space<vmem>>, vector<256x256xbf16>
    %175 = arith.truncf %148 : vector<8x256xf32> to vector<8x256xbf16>
    %cst_65 = arith.constant dense<0.000000e+00> : vector<8x256xf32>
    %176 = tpu.matmul %175, %174, %cst_65 {dimension_numbers = #tpu.dot_dimension_numbers<[1], [0], [0], [1], [0, 0, 1, 1], [], []>} : vector<8x256xbf16>, vector<256x256xbf16>, vector<8x256xf32> -> vector<8x256xf32>
    %c0_66 = arith.constant 0 : index
    %c3840 = arith.constant 3840 : index
    %177 = vector.load %arg4[%c0_66, %c3840] : memref<1x5504xf32, #tpu.memory_space<vmem>>, vector<1x256xf32>
    %178 = vector.broadcast %177 : vector<1x256xf32> to vector<8x256xf32>
    %179 = arith.addf %176, %178 : vector<8x256xf32>
    %cst_67 = arith.constant dense<0.000000e+00> : vector<8xf32>
    %180 = vector.multi_reduction <add>, %179, %cst_67 [1] : vector<8x256xf32> to vector<8xf32>
    %181 = vector.shape_cast %180 : vector<8xf32> to vector<8x1xf32>
    %cst_68 = arith.constant 2.560000e+02 : f32
    %182 = vector.broadcast %cst_68 : f32 to vector<8x1xf32>
    %183 = arith.divf %181, %182 : vector<8x1xf32>
    %184 = vector.broadcast %183 : vector<8x1xf32> to vector<8x256xf32>
    %185 = arith.subf %179, %184 : vector<8x256xf32>
    %186 = arith.mulf %185, %185 : vector<8x256xf32>
    %cst_69 = arith.constant dense<0.000000e+00> : vector<8xf32>
    %187 = vector.multi_reduction <add>, %186, %cst_69 [1] : vector<8x256xf32> to vector<8xf32>
    %188 = vector.shape_cast %187 : vector<8xf32> to vector<8x1xf32>
    %cst_70 = arith.constant 2.560000e+02 : f32
    %189 = vector.broadcast %cst_70 : f32 to vector<8x1xf32>
    %190 = arith.divf %188, %189 : vector<8x1xf32>
    %cst_71 = arith.constant 9.99999974E-6 : f32
    %191 = vector.broadcast %cst_71 : f32 to vector<8x1xf32>
    %192 = arith.addf %190, %191 : vector<8x1xf32>
    %193 = math.rsqrt %192 : vector<8x1xf32>
    %194 = vector.broadcast %193 : vector<8x1xf32> to vector<8x256xf32>
    %195 = arith.mulf %185, %194 : vector<8x256xf32>
    %c0_72 = arith.constant 0 : index
    %c4096 = arith.constant 4096 : index
    %196 = vector.load %arg4[%c0_72, %c4096] : memref<1x5504xf32, #tpu.memory_space<vmem>>, vector<1x256xf32>
    %197 = vector.broadcast %196 : vector<1x256xf32> to vector<8x256xf32>
    %198 = arith.mulf %195, %197 : vector<8x256xf32>
    %c0_73 = arith.constant 0 : index
    %c4352 = arith.constant 4352 : index
    %199 = vector.load %arg4[%c0_73, %c4352] : memref<1x5504xf32, #tpu.memory_space<vmem>>, vector<1x256xf32>
    %200 = vector.broadcast %199 : vector<1x256xf32> to vector<8x256xf32>
    %201 = arith.addf %198, %200 : vector<8x256xf32>
    %cst_74 = arith.constant 0.000000e+00 : f32
    %202 = vector.broadcast %cst_74 : f32 to vector<8x256xf32>
    %203 = arith.maximumf %201, %202 : vector<8x256xf32>
    %c0_75 = arith.constant 0 : index
    %c1024_76 = arith.constant 1024 : index
    %204 = vector.load %arg3[%c0_75, %c1024_76] : memref<256x1536xbf16, #tpu.memory_space<vmem>>, vector<256x256xbf16>
    %205 = arith.truncf %173 : vector<8x256xf32> to vector<8x256xbf16>
    %cst_77 = arith.constant dense<0.000000e+00> : vector<8x256xf32>
    %206 = tpu.matmul %205, %204, %cst_77 {dimension_numbers = #tpu.dot_dimension_numbers<[1], [0], [0], [1], [0, 0, 1, 1], [], []>} : vector<8x256xbf16>, vector<256x256xbf16>, vector<8x256xf32> -> vector<8x256xf32>
    %c0_78 = arith.constant 0 : index
    %c4608 = arith.constant 4608 : index
    %207 = vector.load %arg4[%c0_78, %c4608] : memref<1x5504xf32, #tpu.memory_space<vmem>>, vector<1x256xf32>
    %208 = vector.broadcast %207 : vector<1x256xf32> to vector<8x256xf32>
    %209 = arith.addf %206, %208 : vector<8x256xf32>
    %cst_79 = arith.constant dense<0.000000e+00> : vector<8xf32>
    %210 = vector.multi_reduction <add>, %209, %cst_79 [1] : vector<8x256xf32> to vector<8xf32>
    %211 = vector.shape_cast %210 : vector<8xf32> to vector<8x1xf32>
    %cst_80 = arith.constant 2.560000e+02 : f32
    %212 = vector.broadcast %cst_80 : f32 to vector<8x1xf32>
    %213 = arith.divf %211, %212 : vector<8x1xf32>
    %214 = vector.broadcast %213 : vector<8x1xf32> to vector<8x256xf32>
    %215 = arith.subf %209, %214 : vector<8x256xf32>
    %216 = arith.mulf %215, %215 : vector<8x256xf32>
    %cst_81 = arith.constant dense<0.000000e+00> : vector<8xf32>
    %217 = vector.multi_reduction <add>, %216, %cst_81 [1] : vector<8x256xf32> to vector<8xf32>
    %218 = vector.shape_cast %217 : vector<8xf32> to vector<8x1xf32>
    %cst_82 = arith.constant 2.560000e+02 : f32
    %219 = vector.broadcast %cst_82 : f32 to vector<8x1xf32>
    %220 = arith.divf %218, %219 : vector<8x1xf32>
    %cst_83 = arith.constant 9.99999974E-6 : f32
    %221 = vector.broadcast %cst_83 : f32 to vector<8x1xf32>
    %222 = arith.addf %220, %221 : vector<8x1xf32>
    %223 = math.rsqrt %222 : vector<8x1xf32>
    %224 = vector.broadcast %223 : vector<8x1xf32> to vector<8x256xf32>
    %225 = arith.mulf %215, %224 : vector<8x256xf32>
    %c0_84 = arith.constant 0 : index
    %c4864 = arith.constant 4864 : index
    %226 = vector.load %arg4[%c0_84, %c4864] : memref<1x5504xf32, #tpu.memory_space<vmem>>, vector<1x256xf32>
    %227 = vector.broadcast %226 : vector<1x256xf32> to vector<8x256xf32>
    %228 = arith.mulf %225, %227 : vector<8x256xf32>
    %c0_85 = arith.constant 0 : index
    %c5120 = arith.constant 5120 : index
    %229 = vector.load %arg4[%c0_85, %c5120] : memref<1x5504xf32, #tpu.memory_space<vmem>>, vector<1x256xf32>
    %230 = vector.broadcast %229 : vector<1x256xf32> to vector<8x256xf32>
    %231 = arith.addf %228, %230 : vector<8x256xf32>
    %cst_86 = arith.constant 0.000000e+00 : f32
    %232 = vector.broadcast %cst_86 : f32 to vector<8x256xf32>
    %233 = arith.maximumf %231, %232 : vector<8x256xf32>
    %c0_87 = arith.constant 0 : index
    %c1280_88 = arith.constant 1280 : index
    %234 = vector.load %arg3[%c0_87, %c1280_88] : memref<256x1536xbf16, #tpu.memory_space<vmem>>, vector<256x128xbf16>
    %235 = arith.truncf %203 : vector<8x256xf32> to vector<8x256xbf16>
    %cst_89 = arith.constant dense<0.000000e+00> : vector<8x128xf32>
    %236 = tpu.matmul %235, %234, %cst_89 {dimension_numbers = #tpu.dot_dimension_numbers<[1], [0], [0], [1], [0, 0, 1, 1], [], []>} : vector<8x256xbf16>, vector<256x128xbf16>, vector<8x128xf32> -> vector<8x128xf32>
    %c0_90 = arith.constant 0 : index
    %c1408 = arith.constant 1408 : index
    %237 = vector.load %arg3[%c0_90, %c1408] : memref<256x1536xbf16, #tpu.memory_space<vmem>>, vector<256x128xbf16>
    %238 = arith.truncf %233 : vector<8x256xf32> to vector<8x256xbf16>
    %cst_91 = arith.constant dense<0.000000e+00> : vector<8x128xf32>
    %239 = tpu.matmul %238, %237, %cst_91 {dimension_numbers = #tpu.dot_dimension_numbers<[1], [0], [0], [1], [0, 0, 1, 1], [], []>} : vector<8x256xbf16>, vector<256x128xbf16>, vector<8x128xf32> -> vector<8x128xf32>
    %240 = arith.addf %236, %239 : vector<8x128xf32>
    %c0_92 = arith.constant 0 : index
    %c5376 = arith.constant 5376 : index
    %241 = vector.load %arg4[%c0_92, %c5376] : memref<1x5504xf32, #tpu.memory_space<vmem>>, vector<1x128xf32>
    %242 = vector.broadcast %241 : vector<1x128xf32> to vector<8x128xf32>
    %243 = arith.addf %240, %242 : vector<8x128xf32>
    %c0_93 = arith.constant 0 : index
    %c0_94 = arith.constant 0 : index
    %244 = vector.load %arg5[%c0_93, %c0_94] : memref<8x128xf32, #tpu.memory_space<vmem>>, vector<8x128xf32>
    tpu.vector_store %arg5[%c0_93, %c0_94], %243 {strides = array<i32>} : memref<8x128xf32, #tpu.memory_space<vmem>>, vector<8x128xf32>,
    return
  }
  func.func @transform_0(%arg0: i32) -> (i32, i32) {
    %c0_i32 = arith.constant 0 : i32
    %c0_i32_0 = arith.constant 0 : i32
    return %arg0, %c0_i32 : i32, i32
  }
  func.func @transform_1(%arg0: i32) -> (i32, i32) {
    %c0_i32 = arith.constant 0 : i32
    %c0_i32_0 = arith.constant 0 : i32
    %c0_i32_1 = arith.constant 0 : i32
    return %c0_i32, %c0_i32_0 : i32, i32
  }
  func.func @transform_2(%arg0: i32) -> (i32, i32) {
    %c0_i32 = arith.constant 0 : i32
    %c0_i32_0 = arith.constant 0 : i32
    %c0_i32_1 = arith.constant 0 : i32
    return %c0_i32, %c0_i32_0 : i32, i32
  }
  func.func @transform_3(%arg0: i32) -> (i32, i32) {
    %c0_i32 = arith.constant 0 : i32
    %c0_i32_0 = arith.constant 0 : i32
    %c0_i32_1 = arith.constant 0 : i32
    return %c0_i32, %c0_i32_0 : i32, i32
  }
  func.func @transform_4(%arg0: i32) -> (i32, i32) {
    %c0_i32 = arith.constant 0 : i32
    %c0_i32_0 = arith.constant 0 : i32
    return %arg0, %c0_i32 : i32, i32
  }
}

</mosaic_0001>

<llo_original>
// kernel: push_network_forward.1
$region0: #{push_network_forward.1}
  #allocation0 [shape = 'u32[]', space=smem, size = 0x4, offset = 0x4, fixed_abs, tag = 'smem constant byte address 0x4 - core index']
  #allocation1 [shape = 'u32[144,128]{1,0:T(1,128)}', space=vmem, size = 0x12000, scoped, tag = 'internal scratch']
  %s0 = inlined_call_operand.vmem [shape: bf16[8,128], index: 0, kind: input, shape index: {}]
  %s1 = inlined_call_operand.vmem [shape: bf16[128,512], index: 1, kind: input, shape index: {}]
  %s2 = inlined_call_operand.vmem [shape: bf16[256,1536], index: 2, kind: input, shape index: {}]
  %s3 = inlined_call_operand.vmem [shape: f32[1,5504], index: 3, kind: input, shape index: {}]
  %s4 = inlined_call_operand.vmem [shape: f32[8,128], index: 4, kind: output, shape index: {}]
  %s5 = sld [smem:[#allocation0]]
  $region26: #{push_network_forward.1} parent=0
    _
  %s7 = ssub.s32 1, %s5
  %s8 = scalar_select 0, %s7, %s5
  // Predicated region
  $region2: #{push_network_forward.1} parent=0 // pred_check
    _
  $region3: #{push_network_forward.1} parent=0 // pred_check_branch
    %10 = sbr.rel (0) target = $region5
  $region4: #{push_network_forward.1} parent=0 // pred_region
    _
  $region5: #{push_network_forward.1} parent=0 // pred_fallthru
    _
  // Predicated region
  $region6: #{push_network_forward.1} parent=0 // pred_check
    _
  $region7: #{push_network_forward.1} parent=0 // pred_check_branch
    %12 = sbr.rel (0) target = $region9
  $region8: #{push_network_forward.1} parent=0 // pred_region
    _
  $region9: #{push_network_forward.1} parent=0 // pred_fallthru
    _
  // Predicated region
  $region10: #{push_network_forward.1} parent=0 // pred_check
    _
  $region11: #{push_network_forward.1} parent=0 // pred_check_branch
    %14 = sbr.rel (0) target = $region13
  $region12: #{push_network_forward.1} parent=0 // pred_region
    _
  $region13: #{push_network_forward.1} parent=0 // pred_fallthru
    _
  // Predicated region
  $region14: #{push_network_forward.1} parent=0 // pred_check
    _
  $region15: #{push_network_forward.1} parent=0 // pred_check_branch
    %16 = sbr.rel (0) target = $region17
  $region16: #{push_network_forward.1} parent=0 // pred_region
    _
  $region17: #{push_network_forward.1} parent=0 // pred_fallthru
    _
  %v18 = vld [vmem:[%s0] sm:$0xf]
  %v19 = vld [vmem:[%s1] sm:$0xff]
  %v20 = vld [vmem:[%s1 + $0x8] sm:$0xff]
  %v21 = vld [vmem:[%s1 + $0x10] sm:$0xff]
  %v22 = vld [vmem:[%s1 + $0x18] sm:$0xff]
  %v23 = vld [vmem:[%s1 + $0x20] sm:$0xff]
  %v24 = vld [vmem:[%s1 + $0x28] sm:$0xff]
  %v25 = vld [vmem:[%s1 + $0x30] sm:$0xff]
  %v26 = vld [vmem:[%s1 + $0x38] sm:$0xff]
  %v27 = vld [vmem:[%s1 + $0x40] sm:$0xff]
  %v28 = vld [vmem:[%s1 + $0x48] sm:$0xff]
  %v29 = vld [vmem:[%s1 + $0x50] sm:$0xff]
  %v30 = vld [vmem:[%s1 + $0x58] sm:$0xff]
  %v31 = vld [vmem:[%s1 + $0x60] sm:$0xff]
  %v32 = vld [vmem:[%s1 + $0x68] sm:$0xff]
  %v33 = vld [vmem:[%s1 + $0x70] sm:$0xff]
  %v34 = vld [vmem:[%s1 + $0x78] sm:$0xff]
  %v35 = vld [vmem:[%s1 + $0x80] sm:$0xff]
  %v36 = vld [vmem:[%s1 + $0x88] sm:$0xff]
  %v37 = vld [vmem:[%s1 + $0x90] sm:$0xff]
  %v38 = vld [vmem:[%s1 + $0x98] sm:$0xff]
  %v39 = vld [vmem:[%s1 + $0xa0] sm:$0xff]
  %v40 = vld [vmem:[%s1 + $0xa8] sm:$0xff]
  %v41 = vld [vmem:[%s1 + $0xb0] sm:$0xff]
  %v42 = vld [vmem:[%s1 + $0xb8] sm:$0xff]
  %v43 = vld [vmem:[%s1 + $0xc0] sm:$0xff]
  %v44 = vld [vmem:[%s1 + $0xc8] sm:$0xff]
  %v45 = vld [vmem:[%s1 + $0xd0] sm:$0xff]
  %v46 = vld [vmem:[%s1 + $0xd8] sm:$0xff]
  %v47 = vld [vmem:[%s1 + $0xe0] sm:$0xff]
  %v48 = vld [vmem:[%s1 + $0xe8] sm:$0xff]
  %v49 = vld [vmem:[%s1 + $0xf0] sm:$0xff]
  %v50 = vld [vmem:[%s1 + $0xf8] sm:$0xff]
  %v51 = vld [vmem:[%s3] sm:$0xf]
  %v53 = vlaneseq
  %v54 = vshrl.u32 %v53, 7
  %v55 = vsub.s32 0, %v54
  %v56 = vrot.slane %v51, %v55
  %v57 = vlaneseq
  %v58 = vshrl.u32 %v57, 7
  %v59 = vsub.s32 1, %v58
  %v60 = vrot.slane %v51, %v59
  %v61 = vlaneseq
  %v62 = vshrl.u32 %v61, 7
  %v63 = vsub.s32 2, %v62
  %v64 = vrot.slane %v51, %v63
  %v65 = vlaneseq
  %v66 = vshrl.u32 %v65, 7
  %v67 = vsub.s32 3, %v66
  %v68 = vrot.slane %v51, %v67
  %v105 = vunpack.c.l.b16 %v19
  %v106 = vunpack.c.h.b16 %v19
  %v107 = vunpack.c.l.b16 %v20
  %v108 = vunpack.c.h.b16 %v20
  %v109 = vunpack.c.l.b16 %v21
  %v110 = vunpack.c.h.b16 %v21
  %v111 = vunpack.c.l.b16 %v22
  %v112 = vunpack.c.h.b16 %v22
  %v113 = vunpack.c.l.b16 %v23
  %v114 = vunpack.c.h.b16 %v23
  %v115 = vunpack.c.l.b16 %v24
  %v116 = vunpack.c.h.b16 %v24
  %v117 = vunpack.c.l.b16 %v25
  %v118 = vunpack.c.h.b16 %v25
  %v119 = vunpack.c.l.b16 %v26
  %v120 = vunpack.c.h.b16 %v26
  %v121 = vunpack.c.l.b16 %v27
  %v122 = vunpack.c.h.b16 %v27
  %v123 = vunpack.c.l.b16 %v28
  %v124 = vunpack.c.h.b16 %v28
  %v125 = vunpack.c.l.b16 %v29
  %v126 = vunpack.c.h.b16 %v29
  %v127 = vunpack.c.l.b16 %v30
  %v128 = vunpack.c.h.b16 %v30
  %v129 = vunpack.c.l.b16 %v31
  %v130 = vunpack.c.h.b16 %v31
  %v131 = vunpack.c.l.b16 %v32
  %v132 = vunpack.c.h.b16 %v32
  %v133 = vunpack.c.l.b16 %v33
  %v134 = vunpack.c.h.b16 %v33
  %v135 = vunpack.c.l.b16 %v34
  %v136 = vunpack.c.h.b16 %v34
  %v137 = vunpack.c.l.b16 %v35
  %v138 = vunpack.c.h.b16 %v35
  %v139 = vunpack.c.l.b16 %v36
  %v140 = vunpack.c.h.b16 %v36
  %v141 = vunpack.c.l.b16 %v37
  %v142 = vunpack.c.h.b16 %v37
  %v143 = vunpack.c.l.b16 %v38
  %v144 = vunpack.c.h.b16 %v38
  %v145 = vunpack.c.l.b16 %v39
  %v146 = vunpack.c.h.b16 %v39
  %v147 = vunpack.c.l.b16 %v40
  %v148 = vunpack.c.h.b16 %v40
  %v149 = vunpack.c.l.b16 %v41
  %v150 = vunpack.c.h.b16 %v41
  %v151 = vunpack.c.l.b16 %v42
  %v152 = vunpack.c.h.b16 %v42
  %v153 = vunpack.c.l.b16 %v43
  %v154 = vunpack.c.h.b16 %v43
  %v155 = vunpack.c.l.b16 %v44
  %v156 = vunpack.c.h.b16 %v44
  %v157 = vunpack.c.l.b16 %v45
  %v158 = vunpack.c.h.b16 %v45
  %v159 = vunpack.c.l.b16 %v46
  %v160 = vunpack.c.h.b16 %v46
  %v161 = vunpack.c.l.b16 %v47
  %v162 = vunpack.c.h.b16 %v47
  %v163 = vunpack.c.l.b16 %v48
  %v164 = vunpack.c.h.b16 %v48
  %v165 = vunpack.c.l.b16 %v49
  %v166 = vunpack.c.h.b16 %v49
  %v167 = vunpack.c.l.b16 %v50
  %v168 = vunpack.c.h.b16 %v50
  %v169 = vpack.c.b16 %v109, %v105
  %v170 = vpack.c.b16 %v110, %v106
  %v171 = vpack.c.b16 %v111, %v107
  %v172 = vpack.c.b16 %v112, %v108
  %v173 = vpack.c.b16 %v117, %v113
  %v174 = vpack.c.b16 %v118, %v114
  %v175 = vpack.c.b16 %v119, %v115
  %v176 = vpack.c.b16 %v120, %v116
  %v177 = vpack.c.b16 %v125, %v121
  %v178 = vpack.c.b16 %v126, %v122
  %v179 = vpack.c.b16 %v127, %v123
  %v180 = vpack.c.b16 %v128, %v124
  %v181 = vpack.c.b16 %v133, %v129
  %v182 = vpack.c.b16 %v134, %v130
  %v183 = vpack.c.b16 %v135, %v131
  %v184 = vpack.c.b16 %v136, %v132
  %v185 = vpack.c.b16 %v141, %v137
  %v186 = vpack.c.b16 %v142, %v138
  %v187 = vpack.c.b16 %v143, %v139
  %v188 = vpack.c.b16 %v144, %v140
  %v189 = vpack.c.b16 %v149, %v145
  %v190 = vpack.c.b16 %v150, %v146
  %v191 = vpack.c.b16 %v151, %v147
  %v192 = vpack.c.b16 %v152, %v148
  %v193 = vpack.c.b16 %v157, %v153
  %v194 = vpack.c.b16 %v158, %v154
  %v195 = vpack.c.b16 %v159, %v155
  %v196 = vpack.c.b16 %v160, %v156
  %v197 = vpack.c.b16 %v165, %v161
  %v198 = vpack.c.b16 %v166, %v162
  %v199 = vpack.c.b16 %v167, %v163
  %v200 = vpack.c.b16 %v168, %v164
  %233 = vmatprep.subr.bf16.mxu0 %v170
  %234 = vmatpush1.bf16.msra.mxu0 %v169
  %235 = vmatprep.subr.bf16.mxu0 %v174
  %236 = vmatpush1.bf16.msra.mxu0 %v173
  %237 = vmatprep.subr.bf16.mxu0 %v178
  %238 = vmatpush1.bf16.msra.mxu0 %v177
  %239 = vmatprep.subr.bf16.mxu0 %v182
  %240 = vmatpush1.bf16.msra.mxu0 %v181
  %241 = vmatprep.subr.bf16.mxu0 %v186
  %242 = vmatpush1.bf16.msra.mxu0 %v185
  %243 = vmatprep.subr.bf16.mxu0 %v190
  %244 = vmatpush1.bf16.msra.mxu0 %v189
  %245 = vmatprep.subr.bf16.mxu0 %v194
  %246 = vmatpush1.bf16.msra.mxu0 %v193
  %247 = vmatprep.subr.bf16.mxu0 %v198
  %248 = vmatpush1.bf16.msra.mxu0 %v197
  %249 = vmatprep.subr.bf16.mxu0 0
  %250 = vmatpush1.bf16.msra.mxu0 0
  %251 = vmatprep.subr.bf16.mxu0 0
  %252 = vmatpush1.bf16.msra.mxu0 0
  %253 = vmatprep.subr.bf16.mxu0 0
  %254 = vmatpush1.bf16.msra.mxu0 0
  %255 = vmatprep.subr.bf16.mxu0 0
  %256 = vmatpush1.bf16.msra.mxu0 0
  %257 = vmatprep.subr.bf16.mxu0 0
  %258 = vmatpush1.bf16.msra.mxu0 0
  %259 = vmatprep.subr.bf16.mxu0 0
  %260 = vmatpush1.bf16.msra.mxu0 0
  %261 = vmatprep.subr.bf16.mxu0 0
  %262 = vmatpush1.bf16.msra.mxu0 0
  %263 = vmatprep.subr.bf16.mxu0 0
  %264 = vmatpush1.bf16.msra.mxu0 0
  %265 = vmatprep.mubr.bf16.mxu0 0
  %266 = vmatmul.mubr.bf16.gmra.mrb[0].mxu0 %v18
  %v267 = vpop.f32.mrb[0].mxu0
  %v268 = vadd.f32 %v56, %v267
  %v269 = vpop.f32.mrb[0].mxu0
  %v270 = vadd.f32 %v60, %v269
  %v271 = vpop.f32.mrb[0].mxu0
  %v272 = vpop.f32.mrb[0].mxu0
  %273 = vdwg.mxu0
  %274 = vmatprep.subr.bf16.mxu0 %v172
  %275 = vmatpush1.bf16.msra.mxu0 %v171
  %276 = vmatprep.subr.bf16.mxu0 %v176
  %277 = vmatpush1.bf16.msra.mxu0 %v175
  %278 = vmatprep.subr.bf16.mxu0 %v180
  %279 = vmatpush1.bf16.msra.mxu0 %v179
  %280 = vmatprep.subr.bf16.mxu0 %v184
  %281 = vmatpush1.bf16.msra.mxu0 %v183
  %282 = vmatprep.subr.bf16.mxu0 %v188
  %283 = vmatpush1.bf16.msra.mxu0 %v187
  %284 = vmatprep.subr.bf16.mxu0 %v192
  %285 = vmatpush1.bf16.msra.mxu0 %v191
  %286 = vmatprep.subr.bf16.mxu0 %v196
  %287 = vmatpush1.bf16.msra.mxu0 %v195
  %288 = vmatprep.subr.bf16.mxu0 %v200
  %289 = vmatpush1.bf16.msra.mxu0 %v199
  %290 = vmatprep.subr.bf16.mxu0 0
  %291 = vmatpush1.bf16.msra.mxu0 0
  %292 = vmatprep.subr.bf16.mxu0 0
  %293 = vmatpush1.bf16.msra.mxu0 0
  %294 = vmatprep.subr.bf16.mxu0 0
  %295 = vmatpush1.bf16.msra.mxu0 0
  %296 = vmatprep.subr.bf16.mxu0 0
  %297 = vmatpush1.bf16.msra.mxu0 0
  %298 = vmatprep.subr.bf16.mxu0 0
  %299 = vmatpush1.bf16.msra.mxu0 0
  %300 = vmatprep.subr.bf16.mxu0 0
  %301 = vmatpush1.bf16.msra.mxu0 0
  %302 = vmatprep.subr.bf16.mxu0 0
  %303 = vmatpush1.bf16.msra.mxu0 0
  %304 = vmatprep.subr.bf16.mxu0 0
  %305 = vmatpush1.bf16.msra.mxu0 0
  %306 = vmatprep.mubr.bf16.mxu0 0
  %307 = vmatmul.mubr.bf16.gmra.mrb[0].mxu0 %v18
  %v308 = vpop.f32.mrb[0].mxu0
  %v309 = vadd.f32 %v64, %v308
  %v310 = vpop.f32.mrb[0].mxu0
  %v311 = vadd.f32 %v68, %v310
  %v312 = vpop.f32.mrb[0].mxu0
  %v313 = vpop.f32.mrb[0].mxu0
  %314 = vdwg.mxu0
  %v315 = vadd.f32 %v268, %v270
  %316 = vadd.xlane.f32.xlu0 %v315
  %v317 = vpop.xlane.xlu0 %316
  %v318 = vrcp.pop 256.0
  %v319 = vmul.f32 %v317, %v318
  %v320 = vsub.f32 %v268, %v319
  %v321 = vsub.f32 %v270, %v319
  %v322 = vmul.f32 %v320, %v320
  %v323 = vmul.f32 %v321, %v321
  %v324 = vadd.f32 %v322, %v323
  %325 = vadd.xlane.f32.xlu0 %v324
  %v326 = vpop.xlane.xlu0 %325
  %v327 = vmul.f32 %v326, %v318
  %v328 = vadd.f32 %v327, 1e-05
  %v329 = vrsqrt.pop %v328
  %v330 = vmul.f32 %v320, %v329
  %v331 = vmul.f32 %v321, %v329
  %v332 = vld [vmem:[%s3 + $0x4] sm:$0x3]
  %v334 = vlaneseq
  %v335 = vshrl.u32 %v334, 7
  %v336 = vsub.s32 0, %v335
  %v337 = vrot.slane %v332, %v336
  %v338 = vlaneseq
  %v339 = vshrl.u32 %v338, 7
  %v340 = vsub.s32 1, %v339
  %v341 = vrot.slane %v332, %v340
  %v344 = vmul.f32 %v330, %v337
  %v345 = vmul.f32 %v331, %v341
  %v346 = vld [vmem:[%s3 + $0x6] sm:$0x3]
  %v348 = vlaneseq
  %v349 = vshrl.u32 %v348, 7
  %v350 = vsub.s32 0, %v349
  %v351 = vrot.slane %v346, %v350
  %v352 = vlaneseq
  %v353 = vshrl.u32 %v352, 7
  %v354 = vsub.s32 1, %v353
  %v355 = vrot.slane %v346, %v354
  %v358 = vadd.f32 %v344, %v351
  %v359 = vadd.f32 %v345, %v355
  %v360 = vmax.f32 %v358, 0.0
  %v361 = vmax.f32 %v359, 0.0
  %v362 = vadd.f32 %v309, %v311
  %363 = vadd.xlane.f32.xlu0 %v362
  %v364 = vpop.xlane.xlu0 %363
  %v365 = vmul.f32 %v364, %v318
  %v366 = vsub.f32 %v309, %v365
  %v367 = vsub.f32 %v311, %v365
  %v368 = vmul.f32 %v366, %v366
  %v369 = vmul.f32 %v367, %v367
  %v370 = vadd.f32 %v368, %v369
  %371 = vadd.xlane.f32.xlu0 %v370
  %v372 = vpop.xlane.xlu0 %371
  %v373 = vmul.f32 %v372, %v318
  %v374 = vadd.f32 %v373, 1e-05
  %v375 = vrsqrt.pop %v374
  %v376 = vmul.f32 %v366, %v375
  %v377 = vmul.f32 %v367, %v375
  %v378 = vld [vmem:[%s3 + $0x8] sm:$0x3]
  %v380 = vlaneseq
  %v381 = vshrl.u32 %v380, 7
  %v382 = vsub.s32 0, %v381
  %v383 = vrot.slane %v378, %v382
  %v384 = vlaneseq
  %v385 = vshrl.u32 %v384, 7
  %v386 = vsub.s32 1, %v385
  %v387 = vrot.slane %v378, %v386
  %v390 = vmul.f32 %v376, %v383
  %v391 = vmul.f32 %v377, %v387
  %v392 = vld [vmem:[%s3 + $0xa] sm:$0x3]
  %v394 = vlaneseq
  %v395 = vshrl.u32 %v394, 7
  %v396 = vsub.s32 0, %v395
  %v397 = vrot.slane %v392, %v396
  %v398 = vlaneseq
  %v399 = vshrl.u32 %v398, 7
  %v400 = vsub.s32 1, %v399
  %v401 = vrot.slane %v392, %v400
  %v404 = vadd.f32 %v390, %v397
  %v405 = vadd.f32 %v391, %v401
  %v406 = vmax.f32 %v404, 0.0
  %v407 = vmax.f32 %v405, 0.0
  %v408 = vld [vmem:[%s2] sm:$0xf]
  %v409 = vld [vmem:[%s2 + $0x30] sm:$0xf]
  %v410 = vld [vmem:[%s2 + $0x60] sm:$0xf]
  %v411 = vld [vmem:[%s2 + $0x90] sm:$0xf]
  %v412 = vld [vmem:[%s2 + $0xc0] sm:$0xf]
  %v413 = vld [vmem:[%s2 + $0xf0] sm:$0xf]
  %v414 = vld [vmem:[%s2 + $0x120] sm:$0xf]
  %v415 = vld [vmem:[%s2 + $0x150] sm:$0xf]
  %v416 = vld [vmem:[%s2 + $0x180] sm:$0xf]
  %v417 = vld [vmem:[%s2 + $0x1b0] sm:$0xf]
  %v418 = vld [vmem:[%s2 + $0x1e0] sm:$0xf]
  %v419 = vld [vmem:[%s2 + $0x210] sm:$0xf]
  %v420 = vld [vmem:[%s2 + $0x240] sm:$0xf]
  %v421 = vld [vmem:[%s2 + $0x270] sm:$0xf]
  %v422 = vld [vmem:[%s2 + $0x2a0] sm:$0xf]
  %v423 = vld [vmem:[%s2 + $0x2d0] sm:$0xf]
  %v424 = vld [vmem:[%s2 + $0x300] sm:$0xf]
  %v425 = vld [vmem:[%s2 + $0x330] sm:$0xf]
  %v426 = vld [vmem:[%s2 + $0x360] sm:$0xf]
  %v427 = vld [vmem:[%s2 + $0x390] sm:$0xf]
  %v428 = vld [vmem:[%s2 + $0x3c0] sm:$0xf]
  %v429 = vld [vmem:[%s2 + $0x3f0] sm:$0xf]
  %v430 = vld [vmem:[%s2 + $0x420] sm:$0xf]
  %v431 = vld [vmem:[%s2 + $0x450] sm:$0xf]
  %v432 = vld [vmem:[%s2 + $0x480] sm:$0xf]
  %v433 = vld [vmem:[%s2 + $0x4b0] sm:$0xf]
  %v434 = vld [vmem:[%s2 + $0x4e0] sm:$0xf]
  %v435 = vld [vmem:[%s2 + $0x510] sm:$0xf]
  %v436 = vld [vmem:[%s2 + $0x540] sm:$0xf]
  %v437 = vld [vmem:[%s2 + $0x570] sm:$0xf]
  %v438 = vld [vmem:[%s2 + $0x5a0] sm:$0xf]
  %v439 = vld [vmem:[%s2 + $0x5d0] sm:$0xf]
  %v440 = vpack.c.bf16 %v360, %v360
  %v441 = vpack.c.bf16 %v361, %v361
  %v442 = vld [vmem:[%s3 + $0xc] sm:$0x1]
  %v444 = vlaneseq
  %v445 = vshrl.u32 %v444, 7
  %v446 = vsub.s32 0, %v445
  %v447 = vrot.slane %v442, %v446
  %v481 = vunpack.c.l.b16 %v408
  %v482 = vunpack.c.l.b16 %v409
  %v483 = vunpack.c.l.b16 %v410
  %v484 = vunpack.c.l.b16 %v411
  %v485 = vunpack.c.l.b16 %v412
  %v486 = vunpack.c.l.b16 %v413
  %v487 = vunpack.c.l.b16 %v414
  %v488 = vunpack.c.l.b16 %v415
  %v489 = vunpack.c.l.b16 %v416
  %v490 = vunpack.c.l.b16 %v417
  %v491 = vunpack.c.l.b16 %v418
  %v492 = vunpack.c.l.b16 %v419
  %v493 = vunpack.c.l.b16 %v420
  %v494 = vunpack.c.l.b16 %v421
  %v495 = vunpack.c.l.b16 %v422
  %v496 = vunpack.c.l.b16 %v423
  %v497 = vunpack.c.l.b16 %v424
  %v498 = vunpack.c.l.b16 %v425
  %v499 = vunpack.c.l.b16 %v426
  %v500 = vunpack.c.l.b16 %v427
  %v501 = vunpack.c.l.b16 %v428
  %v502 = vunpack.c.l.b16 %v429
  %v503 = vunpack.c.l.b16 %v430
  %v504 = vunpack.c.l.b16 %v431
  %v505 = vunpack.c.l.b16 %v432
  %v506 = vunpack.c.l.b16 %v433
  %v507 = vunpack.c.l.b16 %v434
  %v508 = vunpack.c.l.b16 %v435
  %v509 = vunpack.c.l.b16 %v436
  %v510 = vunpack.c.l.b16 %v437
  %v511 = vunpack.c.l.b16 %v438
  %v512 = vunpack.c.l.b16 %v439
  %v513 = vpack.c.b16 %v482, %v481
  %v514 = vpack.c.b16 %v484, %v483
  %v515 = vpack.c.b16 %v486, %v485
  %v516 = vpack.c.b16 %v488, %v487
  %v517 = vpack.c.b16 %v490, %v489
  %v518 = vpack.c.b16 %v492, %v491
  %v519 = vpack.c.b16 %v494, %v493
  %v520 = vpack.c.b16 %v496, %v495
  %v521 = vpack.c.b16 %v498, %v497
  %v522 = vpack.c.b16 %v500, %v499
  %v523 = vpack.c.b16 %v502, %v501
  %v524 = vpack.c.b16 %v504, %v503
  %v525 = vpack.c.b16 %v506, %v505
  %v526 = vpack.c.b16 %v508, %v507
  %v527 = vpack.c.b16 %v510, %v509
  %v528 = vpack.c.b16 %v512, %v511
  %545 = vmatprep.subr.bf16.mxu0 0
  %546 = vmatpush1.bf16.msra.mxu0 %v513
  %547 = vmatprep.subr.bf16.mxu0 0
  %548 = vmatpush1.bf16.msra.mxu0 %v514
  %549 = vmatprep.subr.bf16.mxu0 0
  %550 = vmatpush1.bf16.msra.mxu0 %v515
  %551 = vmatprep.subr.bf16.mxu0 0
  %552 = vmatpush1.bf16.msra.mxu0 %v516
  %553 = vmatprep.subr.bf16.mxu0 0
  %554 = vmatpush1.bf16.msra.mxu0 %v517
  %555 = vmatprep.subr.bf16.mxu0 0
  %556 = vmatpush1.bf16.msra.mxu0 %v518
  %557 = vmatprep.subr.bf16.mxu0 0
  %558 = vmatpush1.bf16.msra.mxu0 %v519
  %559 = vmatprep.subr.bf16.mxu0 0
  %560 = vmatpush1.bf16.msra.mxu0 %v520
  %561 = vmatprep.subr.bf16.mxu0 0
  %562 = vmatpush1.bf16.msra.mxu0 %v521
  %563 = vmatprep.subr.bf16.mxu0 0
  %564 = vmatpush1.bf16.msra.mxu0 %v522
  %565 = vmatprep.subr.bf16.mxu0 0
  %566 = vmatpush1.bf16.msra.mxu0 %v523
  %567 = vmatprep.subr.bf16.mxu0 0
  %568 = vmatpush1.bf16.msra.mxu0 %v524
  %569 = vmatprep.subr.bf16.mxu0 0
  %570 = vmatpush1.bf16.msra.mxu0 %v525
  %571 = vmatprep.subr.bf16.mxu0 0
  %572 = vmatpush1.bf16.msra.mxu0 %v526
  %573 = vmatprep.subr.bf16.mxu0 0
  %574 = vmatpush1.bf16.msra.mxu0 %v527
  %575 = vmatprep.subr.bf16.mxu0 0
  %576 = vmatpush1.bf16.msra.mxu0 %v528
  %577 = vmatprep.mubr.bf16.mxu0 %v441
  %578 = vmatmul.mubr.bf16.gmra.mrb[0].mxu0 %v440
  %v579 = vpop.f32.mrb[0].mxu0
  %v580 = vadd.f32 %v447, %v579
  %v581 = vpop.f32.mrb[0].mxu0
  %v582 = vpop.f32.mrb[0].mxu0
  %v583 = vpop.f32.mrb[0].mxu0
  %584 = vdwg.mxu0
  %585 = vadd.xlane.f32.xlu0 %v580
  %v586 = vpop.xlane.xlu0 %585
  %v587 = vrcp.pop 128.0
  %v588 = vmul.f32 %v586, %v587
  %v589 = vsub.f32 %v580, %v588
  %v590 = vmul.f32 %v589, %v589
  %591 = vadd.xlane.f32.xlu0 %v590
  %v592 = vpop.xlane.xlu0 %591
  %v593 = vmul.f32 %v592, %v587
  %v594 = vadd.f32 %v593, 1e-05
  %v595 = vrsqrt.pop %v594
  %v596 = vmul.f32 %v589, %v595
  %v597 = vld [vmem:[%s3 + $0xd] sm:$0x1]
  %v599 = vlaneseq
  %v600 = vshrl.u32 %v599, 7
  %v601 = vsub.s32 0, %v600
  %v602 = vrot.slane %v597, %v601
  %v604 = vmul.f32 %v596, %v602
  %v605 = vld [vmem:[%s3 + $0xe] sm:$0x1]
  %v607 = vlaneseq
  %v608 = vshrl.u32 %v607, 7
  %v609 = vsub.s32 0, %v608
  %v610 = vrot.slane %v605, %v609
  %v612 = vadd.f32 %v604, %v610
  %v613 = vmax.f32 %v612, 0.0
  %v614 = vld [vmem:[%s2 + $0x4] sm:$0xf]
  %v615 = vld [vmem:[%s2 + $0x34] sm:$0xf]
  %v616 = vld [vmem:[%s2 + $0x64] sm:$0xf]
  %v617 = vld [vmem:[%s2 + $0x94] sm:$0xf]
  %v618 = vld [vmem:[%s2 + $0xc4] sm:$0xf]
  %v619 = vld [vmem:[%s2 + $0xf4] sm:$0xf]
  %v620 = vld [vmem:[%s2 + $0x124] sm:$0xf]
  %v621 = vld [vmem:[%s2 + $0x154] sm:$0xf]
  %v622 = vld [vmem:[%s2 + $0x184] sm:$0xf]
  %v623 = vld [vmem:[%s2 + $0x1b4] sm:$0xf]
  %v624 = vld [vmem:[%s2 + $0x1e4] sm:$0xf]
  %v625 = vld [vmem:[%s2 + $0x214] sm:$0xf]
  %v626 = vld [vmem:[%s2 + $0x244] sm:$0xf]
  %v627 = vld [vmem:[%s2 + $0x274] sm:$0xf]
  %v628 = vld [vmem:[%s2 + $0x2a4] sm:$0xf]
  %v629 = vld [vmem:[%s2 + $0x2d4] sm:$0xf]
  %v630 = vld [vmem:[%s2 + $0x304] sm:$0xf]
  %v631 = vld [vmem:[%s2 + $0x334] sm:$0xf]
  %v632 = vld [vmem:[%s2 + $0x364] sm:$0xf]
  %v633 = vld [vmem:[%s2 + $0x394] sm:$0xf]
  %v634 = vld [vmem:[%s2 + $0x3c4] sm:$0xf]
  %v635 = vld [vmem:[%s2 + $0x3f4] sm:$0xf]
  %v636 = vld [vmem:[%s2 + $0x424] sm:$0xf]
  %v637 = vld [vmem:[%s2 + $0x454] sm:$0xf]
  %v638 = vld [vmem:[%s2 + $0x484] sm:$0xf]
  %v639 = vld [vmem:[%s2 + $0x4b4] sm:$0xf]
  %v640 = vld [vmem:[%s2 + $0x4e4] sm:$0xf]
  %v641 = vld [vmem:[%s2 + $0x514] sm:$0xf]
  %v642 = vld [vmem:[%s2 + $0x544] sm:$0xf]
  %v643 = vld [vmem:[%s2 + $0x574] sm:$0xf]
  %v644 = vld [vmem:[%s2 + $0x5a4] sm:$0xf]
  %v645 = vld [vmem:[%s2 + $0x5d4] sm:$0xf]
  %v646 = vpack.c.bf16 %v406, %v406
  %v647 = vpack.c.bf16 %v407, %v407
  %v648 = vld [vmem:[%s3 + $0xf] sm:$0x1]
  %v650 = vlaneseq
  %v651 = vshrl.u32 %v650, 7
  %v652 = vsub.s32 0, %v651
  %v653 = vrot.slane %v648, %v652
  %v687 = vunpack.c.l.b16 %v614
  %v688 = vunpack.c.l.b16 %v615
  %v689 = vunpack.c.l.b16 %v616
  %v690 = vunpack.c.l.b16 %v617
  %v691 = vunpack.c.l.b16 %v618
  %v692 = vunpack.c.l.b16 %v619
  %v693 = vunpack.c.l.b16 %v620
  %v694 = vunpack.c.l.b16 %v621
  %v695 = vunpack.c.l.b16 %v622
  %v696 = vunpack.c.l.b16 %v623
  %v697 = vunpack.c.l.b16 %v624
  %v698 = vunpack.c.l.b16 %v625
  %v699 = vunpack.c.l.b16 %v626
  %v700 = vunpack.c.l.b16 %v627
  %v701 = vunpack.c.l.b16 %v628
  %v702 = vunpack.c.l.b16 %v629
  %v703 = vunpack.c.l.b16 %v630
  %v704 = vunpack.c.l.b16 %v631
  %v705 = vunpack.c.l.b16 %v632
  %v706 = vunpack.c.l.b16 %v633
  %v707 = vunpack.c.l.b16 %v634
  %v708 = vunpack.c.l.b16 %v635
  %v709 = vunpack.c.l.b16 %v636
  %v710 = vunpack.c.l.b16 %v637
  %v711 = vunpack.c.l.b16 %v638
  %v712 = vunpack.c.l.b16 %v639
  %v713 = vunpack.c.l.b16 %v640
  %v714 = vunpack.c.l.b16 %v641
  %v715 = vunpack.c.l.b16 %v642
  %v716 = vunpack.c.l.b16 %v643
  %v717 = vunpack.c.l.b16 %v644
  %v718 = vunpack.c.l.b16 %v645
  %v719 = vpack.c.b16 %v688, %v687
  %v720 = vpack.c.b16 %v690, %v689
  %v721 = vpack.c.b16 %v692, %v691
  %v722 = vpack.c.b16 %v694, %v693
  %v723 = vpack.c.b16 %v696, %v695
  %v724 = vpack.c.b16 %v698, %v697
  %v725 = vpack.c.b16 %v700, %v699
  %v726 = vpack.c.b16 %v702, %v701
  %v727 = vpack.c.b16 %v704, %v703
  %v728 = vpack.c.b16 %v706, %v705
  %v729 = vpack.c.b16 %v708, %v707
  %v730 = vpack.c.b16 %v710, %v709
  %v731 = vpack.c.b16 %v712, %v711
  %v732 = vpack.c.b16 %v714, %v713
  %v733 = vpack.c.b16 %v716, %v715
  %v734 = vpack.c.b16 %v718, %v717
  %751 = vmatprep.subr.bf16.mxu0 0
  %752 = vmatpush1.bf16.msra.mxu0 %v719
  %753 = vmatprep.subr.bf16.mxu0 0
  %754 = vmatpush1.bf16.msra.mxu0 %v720
  %755 = vmatprep.subr.bf16.mxu0 0
  %756 = vmatpush1.bf16.msra.mxu0 %v721
  %757 = vmatprep.subr.bf16.mxu0 0
  %758 = vmatpush1.bf16.msra.mxu0 %v722
  %759 = vmatprep.subr.bf16.mxu0 0
  %760 = vmatpush1.bf16.msra.mxu0 %v723
  %761 = vmatprep.subr.bf16.mxu0 0
  %762 = vmatpush1.bf16.msra.mxu0 %v724
  %763 = vmatprep.subr.bf16.mxu0 0
  %764 = vmatpush1.bf16.msra.mxu0 %v725
  %765 = vmatprep.subr.bf16.mxu0 0
  %766 = vmatpush1.bf16.msra.mxu0 %v726
  %767 = vmatprep.subr.bf16.mxu0 0
  %768 = vmatpush1.bf16.msra.mxu0 %v727
  %769 = vmatprep.subr.bf16.mxu0 0
  %770 = vmatpush1.bf16.msra.mxu0 %v728
  %771 = vmatprep.subr.bf16.mxu0 0
  %772 = vmatpush1.bf16.msra.mxu0 %v729
  %773 = vmatprep.subr.bf16.mxu0 0
  %774 = vmatpush1.bf16.msra.mxu0 %v730
  %775 = vmatprep.subr.bf16.mxu0 0
  %776 = vmatpush1.bf16.msra.mxu0 %v731
  %777 = vmatprep.subr.bf16.mxu0 0
  %778 = vmatpush1.bf16.msra.mxu0 %v732
  %779 = vmatprep.subr.bf16.mxu0 0
  %780 = vmatpush1.bf16.msra.mxu0 %v733
  %781 = vmatprep.subr.bf16.mxu0 0
  %782 = vmatpush1.bf16.msra.mxu0 %v734
  %783 = vmatprep.mubr.bf16.mxu0 %v647
  %784 = vmatmul.mubr.bf16.gmra.mrb[0].mxu0 %v646
  %v785 = vpop.f32.mrb[0].mxu0
  %v786 = vadd.f32 %v653, %v785
  %v787 = vpop.f32.mrb[0].mxu0
  %v788 = vpop.f32.mrb[0].mxu0
  %v789 = vpop.f32.mrb[0].mxu0
  %790 = vdwg.mxu0
  %791 = vadd.xlane.f32.xlu0 %v786
  %v792 = vpop.xlane.xlu0 %791
  %v793 = vmul.f32 %v792, %v587
  %v794 = vsub.f32 %v786, %v793
  %v795 = vmul.f32 %v794, %v794
  %796 = vadd.xlane.f32.xlu0 %v795
  %v797 = vpop.xlane.xlu0 %796
  %v798 = vmul.f32 %v797, %v587
  %v799 = vadd.f32 %v798, 1e-05
  %v800 = vrsqrt.pop %v799
  %v801 = vmul.f32 %v794, %v800
  %v802 = vld [vmem:[%s3 + $0x10] sm:$0x1]
  %v804 = vlaneseq
  %v805 = vshrl.u32 %v804, 7
  %v806 = vsub.s32 0, %v805
  %v807 = vrot.slane %v802, %v806
  %v809 = vmul.f32 %v801, %v807
  %v810 = vld [vmem:[%s3 + $0x11] sm:$0x1]
  %v812 = vlaneseq
  %v813 = vshrl.u32 %v812, 7
  %v814 = vsub.s32 0, %v813
  %v815 = vrot.slane %v810, %v814
  %v817 = vadd.f32 %v809, %v815
  %v818 = vmax.f32 %v817, 0.0
  %v819 = vpack.c.bf16 %v613, %v613
  %v820 = vpack.c.bf16 %v818, %v818
  %v821 = vld [vmem:[%s2 + $0x8] sm:$0xff]
  %v822 = vld [vmem:[%s2 + $0x10] sm:$0xff]
  %v823 = vld [vmem:[%s2 + $0x38] sm:$0xff]
  %v824 = vld [vmem:[%s2 + $0x40] sm:$0xff]
  %v825 = vld [vmem:[%s2 + $0x68] sm:$0xff]
  %v826 = vld [vmem:[%s2 + $0x70] sm:$0xff]
  %v827 = vld [vmem:[%s2 + $0x98] sm:$0xff]
  %v828 = vld [vmem:[%s2 + $0xa0] sm:$0xff]
  %v829 = vld [vmem:[%s2 + $0xc8] sm:$0xff]
  %v830 = vld [vmem:[%s2 + $0xd0] sm:$0xff]
  %v831 = vld [vmem:[%s2 + $0xf8] sm:$0xff]
  %v832 = vld [vmem:[%s2 + $0x100] sm:$0xff]
  %v833 = vld [vmem:[%s2 + $0x128] sm:$0xff]
  %v834 = vld [vmem:[%s2 + $0x130] sm:$0xff]
  %v835 = vld [vmem:[%s2 + $0x158] sm:$0xff]
  %v836 = vld [vmem:[%s2 + $0x160] sm:$0xff]
  %v837 = vld [vmem:[%s2 + $0x188] sm:$0xff]
  %v838 = vld [vmem:[%s2 + $0x190] sm:$0xff]
  %v839 = vld [vmem:[%s2 + $0x1b8] sm:$0xff]
  %v840 = vld [vmem:[%s2 + $0x1c0] sm:$0xff]
  %v841 = vld [vmem:[%s2 + $0x1e8] sm:$0xff]
  %v842 = vld [vmem:[%s2 + $0x1f0] sm:$0xff]
  %v843 = vld [vmem:[%s2 + $0x218] sm:$0xff]
  %v844 = vld [vmem:[%s2 + $0x220] sm:$0xff]
  %v845 = vld [vmem:[%s2 + $0x248] sm:$0xff]
  %v846 = vld [vmem:[%s2 + $0x250] sm:$0xff]
  %v847 = vld [vmem:[%s2 + $0x278] sm:$0xff]
  %v848 = vld [vmem:[%s2 + $0x280] sm:$0xff]
  %v849 = vld [vmem:[%s2 + $0x2a8] sm:$0xff]
  %v850 = vld [vmem:[%s2 + $0x2b0] sm:$0xff]
  %v851 = vld [vmem:[%s2 + $0x2d8] sm:$0xff]
  %v852 = vld [vmem:[%s2 + $0x2e0] sm:$0xff]
  %v853 = vld [vmem:[%s2 + $0x308] sm:$0xff]
  %v854 = vld [vmem:[%s2 + $0x310] sm:$0xff]
  %v855 = vld [vmem:[%s2 + $0x338] sm:$0xff]
  %v856 = vld [vmem:[%s2 + $0x340] sm:$0xff]
  %v857 = vld [vmem:[%s2 + $0x368] sm:$0xff]
  %v858 = vld [vmem:[%s2 + $0x370] sm:$0xff]
  %v859 = vld [vmem:[%s2 + $0x398] sm:$0xff]
  %v860 = vld [vmem:[%s2 + $0x3a0] sm:$0xff]
  %v861 = vld [vmem:[%s2 + $0x3c8] sm:$0xff]
  %v862 = vld [vmem:[%s2 + $0x3d0] sm:$0xff]
  %v863 = vld [vmem:[%s2 + $0x3f8] sm:$0xff]
  %v864 = vld [vmem:[%s2 + $0x400] sm:$0xff]
  %v865 = vld [vmem:[%s2 + $0x428] sm:$0xff]
  %v866 = vld [vmem:[%s2 + $0x430] sm:$0xff]
  %v867 = vld [vmem:[%s2 + $0x458] sm:$0xff]
  %v868 = vld [vmem:[%s2 + $0x460] sm:$0xff]
  %v869 = vld [vmem:[%s2 + $0x488] sm:$0xff]
  %v870 = vld [vmem:[%s2 + $0x490] sm:$0xff]
  %v871 = vld [vmem:[%s2 + $0x4b8] sm:$0xff]
  %v872 = vld [vmem:[%s2 + $0x4c0] sm:$0xff]
  %v873 = vld [vmem:[%s2 + $0x4e8] sm:$0xff]
  %v874 = vld [vmem:[%s2 + $0x4f0] sm:$0xff]
  %v875 = vld [vmem:[%s2 + $0x518] sm:$0xff]
  %v876 = vld [vmem:[%s2 + $0x520] sm:$0xff]
  %v877 = vld [vmem:[%s2 + $0x548] sm:$0xff]
  %v878 = vld [vmem:[%s2 + $0x550] sm:$0xff]
  %v879 = vld [vmem:[%s2 + $0x578] sm:$0xff]
  %v880 = vld [vmem:[%s2 + $0x580] sm:$0xff]
  %v881 = vld [vmem:[%s2 + $0x5a8] sm:$0xff]
  %v882 = vld [vmem:[%s2 + $0x5b0] sm:$0xff]
  %v883 = vld [vmem:[%s2 + $0x5d8] sm:$0xff]
  %v884 = vld [vmem:[%s2 + $0x5e0] sm:$0xff]
  %v885 = vld [vmem:[%s3 + $0x12] sm:$0xf]
  %v887 = vlaneseq
  %v888 = vshrl.u32 %v887, 7
  %v889 = vsub.s32 0, %v888
  %v890 = vrot.slane %v885, %v889
  %v891 = vlaneseq
  %v892 = vshrl.u32 %v891, 7
  %v893 = vsub.s32 1, %v892
  %v894 = vrot.slane %v885, %v893
  %v895 = vlaneseq
  %v896 = vshrl.u32 %v895, 7
  %v897 = vsub.s32 2, %v896
  %v898 = vrot.slane %v885, %v897
  %v899 = vlaneseq
  %v900 = vshrl.u32 %v899, 7
  %v901 = vsub.s32 3, %v900
  %v902 = vrot.slane %v885, %v901
  %v971 = vunpack.c.l.b16 %v821
  %v972 = vunpack.c.h.b16 %v821
  %v973 = vunpack.c.l.b16 %v822
  %v974 = vunpack.c.h.b16 %v822
  %v975 = vunpack.c.l.b16 %v823
  %v976 = vunpack.c.h.b16 %v823
  %v977 = vunpack.c.l.b16 %v824
  %v978 = vunpack.c.h.b16 %v824
  %v979 = vunpack.c.l.b16 %v825
  %v980 = vunpack.c.h.b16 %v825
  %v981 = vunpack.c.l.b16 %v826
  %v982 = vunpack.c.h.b16 %v826
  %v983 = vunpack.c.l.b16 %v827
  %v984 = vunpack.c.h.b16 %v827
  %v985 = vunpack.c.l.b16 %v828
  %v986 = vunpack.c.h.b16 %v828
  %v987 = vunpack.c.l.b16 %v829
  %v988 = vunpack.c.h.b16 %v829
  %v989 = vunpack.c.l.b16 %v830
  %v990 = vunpack.c.h.b16 %v830
  %v991 = vunpack.c.l.b16 %v831
  %v992 = vunpack.c.h.b16 %v831
  %v993 = vunpack.c.l.b16 %v832
  %v994 = vunpack.c.h.b16 %v832
  %v995 = vunpack.c.l.b16 %v833
  %v996 = vunpack.c.h.b16 %v833
  %v997 = vunpack.c.l.b16 %v834
  %v998 = vunpack.c.h.b16 %v834
  %v999 = vunpack.c.l.b16 %v835
  %v1000 = vunpack.c.h.b16 %v835
  %v1001 = vunpack.c.l.b16 %v836
  %v1002 = vunpack.c.h.b16 %v836
  %v1003 = vunpack.c.l.b16 %v837
  %v1004 = vunpack.c.h.b16 %v837
  %v1005 = vunpack.c.l.b16 %v838
  %v1006 = vunpack.c.h.b16 %v838
  %v1007 = vunpack.c.l.b16 %v839
  %v1008 = vunpack.c.h.b16 %v839
  %v1009 = vunpack.c.l.b16 %v840
  %v1010 = vunpack.c.h.b16 %v840
  %v1011 = vunpack.c.l.b16 %v841
  %v1012 = vunpack.c.h.b16 %v841
  %v1013 = vunpack.c.l.b16 %v842
  %v1014 = vunpack.c.h.b16 %v842
  %v1015 = vunpack.c.l.b16 %v843
  %v1016 = vunpack.c.h.b16 %v843
  %v1017 = vunpack.c.l.b16 %v844
  %v1018 = vunpack.c.h.b16 %v844
  %v1019 = vunpack.c.l.b16 %v845
  %v1020 = vunpack.c.h.b16 %v845
  %v1021 = vunpack.c.l.b16 %v846
  %v1022 = vunpack.c.h.b16 %v846
  %v1023 = vunpack.c.l.b16 %v847
  %v1024 = vunpack.c.h.b16 %v847
  %v1025 = vunpack.c.l.b16 %v848
  %v1026 = vunpack.c.h.b16 %v848
  %v1027 = vunpack.c.l.b16 %v849
  %v1028 = vunpack.c.h.b16 %v849
  %v1029 = vunpack.c.l.b16 %v850
  %v1030 = vunpack.c.h.b16 %v850
  %v1031 = vunpack.c.l.b16 %v851
  %v1032 = vunpack.c.h.b16 %v851
  %v1033 = vunpack.c.l.b16 %v852
  %v1034 = vunpack.c.h.b16 %v852
  %v1035 = vunpack.c.l.b16 %v853
  %v1036 = vunpack.c.h.b16 %v853
  %v1037 = vunpack.c.l.b16 %v854
  %v1038 = vunpack.c.h.b16 %v854
  %v1039 = vunpack.c.l.b16 %v855
  %v1040 = vunpack.c.h.b16 %v855
  %v1041 = vunpack.c.l.b16 %v856
  %v1042 = vunpack.c.h.b16 %v856
  %v1043 = vunpack.c.l.b16 %v857
  %v1044 = vunpack.c.h.b16 %v857
  %v1045 = vunpack.c.l.b16 %v858
  %v1046 = vunpack.c.h.b16 %v858
  %v1047 = vunpack.c.l.b16 %v859
  %v1048 = vunpack.c.h.b16 %v859
  %v1049 = vunpack.c.l.b16 %v860
  %v1050 = vunpack.c.h.b16 %v860
  %v1051 = vunpack.c.l.b16 %v861
  %v1052 = vunpack.c.h.b16 %v861
  %v1053 = vunpack.c.l.b16 %v862
  %v1054 = vunpack.c.h.b16 %v862
  %v1055 = vunpack.c.l.b16 %v863
  %v1056 = vunpack.c.h.b16 %v863
  %v1057 = vunpack.c.l.b16 %v864
  %v1058 = vunpack.c.h.b16 %v864
  %v1059 = vunpack.c.l.b16 %v865
  %v1060 = vunpack.c.h.b16 %v865
  %v1061 = vunpack.c.l.b16 %v866
  %v1062 = vunpack.c.h.b16 %v866
  %v1063 = vunpack.c.l.b16 %v867
  %v1064 = vunpack.c.h.b16 %v867
  %v1065 = vunpack.c.l.b16 %v868
  %v1066 = vunpack.c.h.b16 %v868
  %v1067 = vunpack.c.l.b16 %v869
  %v1068 = vunpack.c.h.b16 %v869
  %v1069 = vunpack.c.l.b16 %v870
  %v1070 = vunpack.c.h.b16 %v870
  %v1071 = vunpack.c.l.b16 %v871
  %v1072 = vunpack.c.h.b16 %v871
  %v1073 = vunpack.c.l.b16 %v872
  %v1074 = vunpack.c.h.b16 %v872
  %v1075 = vunpack.c.l.b16 %v873
  %v1076 = vunpack.c.h.b16 %v873
  %v1077 = vunpack.c.l.b16 %v874
  %v1078 = vunpack.c.h.b16 %v874
  %v1079 = vunpack.c.l.b16 %v875
  %v1080 = vunpack.c.h.b16 %v875
  %v1081 = vunpack.c.l.b16 %v876
  %v1082 = vunpack.c.h.b16 %v876
  %v1083 = vunpack.c.l.b16 %v877
  %v1084 = vunpack.c.h.b16 %v877
  %v1085 = vunpack.c.l.b16 %v878
  %v1086 = vunpack.c.h.b16 %v878
  %v1087 = vunpack.c.l.b16 %v879
  %v1088 = vunpack.c.h.b16 %v879
  %v1089 = vunpack.c.l.b16 %v880
  %v1090 = vunpack.c.h.b16 %v880
  %v1091 = vunpack.c.l.b16 %v881
  %v1092 = vunpack.c.h.b16 %v881
  %v1093 = vunpack.c.l.b16 %v882
  %v1094 = vunpack.c.h.b16 %v882
  %v1095 = vunpack.c.l.b16 %v883
  %v1096 = vunpack.c.h.b16 %v883
  %v1097 = vunpack.c.l.b16 %v884
  %v1098 = vunpack.c.h.b16 %v884
  %v1099 = vpack.c.b16 %v975, %v971
  %v1100 = vpack.c.b16 %v976, %v972
  %v1101 = vpack.c.b16 %v977, %v973
  %v1102 = vpack.c.b16 %v978, %v974
  %v1103 = vpack.c.b16 %v983, %v979
  %v1104 = vpack.c.b16 %v984, %v980
  %v1105 = vpack.c.b16 %v985, %v981
  %v1106 = vpack.c.b16 %v986, %v982
  %v1107 = vpack.c.b16 %v991, %v987
  %v1108 = vpack.c.b16 %v992, %v988
  %v1109 = vpack.c.b16 %v993, %v989
  %v1110 = vpack.c.b16 %v994, %v990
  %v1111 = vpack.c.b16 %v999, %v995
  %v1112 = vpack.c.b16 %v1000, %v996
  %v1113 = vpack.c.b16 %v1001, %v997
  %v1114 = vpack.c.b16 %v1002, %v998
  %v1115 = vpack.c.b16 %v1007, %v1003
  %v1116 = vpack.c.b16 %v1008, %v1004
  %v1117 = vpack.c.b16 %v1009, %v1005
  %v1118 = vpack.c.b16 %v1010, %v1006
  %v1119 = vpack.c.b16 %v1015, %v1011
  %v1120 = vpack.c.b16 %v1016, %v1012
  %v1121 = vpack.c.b16 %v1017, %v1013
  %v1122 = vpack.c.b16 %v1018, %v1014
  %v1123 = vpack.c.b16 %v1023, %v1019
  %v1124 = vpack.c.b16 %v1024, %v1020
  %v1125 = vpack.c.b16 %v1025, %v1021
  %v1126 = vpack.c.b16 %v1026, %v1022
  %v1127 = vpack.c.b16 %v1031, %v1027
  %v1128 = vpack.c.b16 %v1032, %v1028
  %v1129 = vpack.c.b16 %v1033, %v1029
  %v1130 = vpack.c.b16 %v1034, %v1030
  %v1131 = vpack.c.b16 %v1039, %v1035
  %v1132 = vpack.c.b16 %v1040, %v1036
  %v1133 = vpack.c.b16 %v1041, %v1037
  %v1134 = vpack.c.b16 %v1042, %v1038
  %v1135 = vpack.c.b16 %v1047, %v1043
  %v1136 = vpack.c.b16 %v1048, %v1044
  %v1137 = vpack.c.b16 %v1049, %v1045
  %v1138 = vpack.c.b16 %v1050, %v1046
  %v1139 = vpack.c.b16 %v1055, %v1051
  %v1140 = vpack.c.b16 %v1056, %v1052
  %v1141 = vpack.c.b16 %v1057, %v1053
  %v1142 = vpack.c.b16 %v1058, %v1054
  %v1143 = vpack.c.b16 %v1063, %v1059
  %v1144 = vpack.c.b16 %v1064, %v1060
  %v1145 = vpack.c.b16 %v1065, %v1061
  %v1146 = vpack.c.b16 %v1066, %v1062
  %v1147 = vpack.c.b16 %v1071, %v1067
  %v1148 = vpack.c.b16 %v1072, %v1068
  %v1149 = vpack.c.b16 %v1073, %v1069
  %v1150 = vpack.c.b16 %v1074, %v1070
  %v1151 = vpack.c.b16 %v1079, %v1075
  %v1152 = vpack.c.b16 %v1080, %v1076
  %v1153 = vpack.c.b16 %v1081, %v1077
  %v1154 = vpack.c.b16 %v1082, %v1078
  %v1155 = vpack.c.b16 %v1087, %v1083
  %v1156 = vpack.c.b16 %v1088, %v1084
  %v1157 = vpack.c.b16 %v1089, %v1085
  %v1158 = vpack.c.b16 %v1090, %v1086
  %v1159 = vpack.c.b16 %v1095, %v1091
  %v1160 = vpack.c.b16 %v1096, %v1092
  %v1161 = vpack.c.b16 %v1097, %v1093
  %v1162 = vpack.c.b16 %v1098, %v1094
  %1227 = vmatprep.subr.bf16.mxu0 %v1100
  %1228 = vmatpush1.bf16.msra.mxu0 %v1099
  %1229 = vmatprep.subr.bf16.mxu0 %v1104
  %1230 = vmatpush1.bf16.msra.mxu0 %v1103
  %1231 = vmatprep.subr.bf16.mxu0 %v1108
  %1232 = vmatpush1.bf16.msra.mxu0 %v1107
  %1233 = vmatprep.subr.bf16.mxu0 %v1112
  %1234 = vmatpush1.bf16.msra.mxu0 %v1111
  %1235 = vmatprep.subr.bf16.mxu0 %v1116
  %1236 = vmatpush1.bf16.msra.mxu0 %v1115
  %1237 = vmatprep.subr.bf16.mxu0 %v1120
  %1238 = vmatpush1.bf16.msra.mxu0 %v1119
  %1239 = vmatprep.subr.bf16.mxu0 %v1124
  %1240 = vmatpush1.bf16.msra.mxu0 %v1123
  %1241 = vmatprep.subr.bf16.mxu0 %v1128
  %1242 = vmatpush1.bf16.msra.mxu0 %v1127
  %1243 = vmatprep.subr.bf16.mxu0 %v1132
  %1244 = vmatpush1.bf16.msra.mxu0 %v1131
  %1245 = vmatprep.subr.bf16.mxu0 %v1136
  %1246 = vmatpush1.bf16.msra.mxu0 %v1135
  %1247 = vmatprep.subr.bf16.mxu0 %v1140
  %1248 = vmatpush1.bf16.msra.mxu0 %v1139
  %1249 = vmatprep.subr.bf16.mxu0 %v1144
  %1250 = vmatpush1.bf16.msra.mxu0 %v1143
  %1251 = vmatprep.subr.bf16.mxu0 %v1148
  %1252 = vmatpush1.bf16.msra.mxu0 %v1147
  %1253 = vmatprep.subr.bf16.mxu0 %v1152
  %1254 = vmatpush1.bf16.msra.mxu0 %v1151
  %1255 = vmatprep.subr.bf16.mxu0 %v1156
  %1256 = vmatpush1.bf16.msra.mxu0 %v1155
  %1257 = vmatprep.subr.bf16.mxu0 %v1160
  %1258 = vmatpush1.bf16.msra.mxu0 %v1159
  %1259 = vmatprep.mubr.bf16.mxu0 %v820
  %1260 = vmatmul.mubr.bf16.gmra.mrb[0].mxu0 %v819
  %v1261 = vpop.f32.mrb[0].mxu0
  %v1262 = vadd.f32 %v890, %v1261
  %v1263 = vpop.f32.mrb[0].mxu0
  %v1264 = vadd.f32 %v894, %v1263
  %v1265 = vpop.f32.mrb[0].mxu0
  %v1266 = vpop.f32.mrb[0].mxu0
  %1267 = vdwg.mxu0
  %1268 = vmatprep.subr.bf16.mxu0 %v1102
  %1269 = vmatpush1.bf16.msra.mxu0 %v1101
  %1270 = vmatprep.subr.bf16.mxu0 %v1106
  %1271 = vmatpush1.bf16.msra.mxu0 %v1105
  %1272 = vmatprep.subr.bf16.mxu0 %v1110
  %1273 = vmatpush1.bf16.msra.mxu0 %v1109
  %1274 = vmatprep.subr.bf16.mxu0 %v1114
  %1275 = vmatpush1.bf16.msra.mxu0 %v1113
  %1276 = vmatprep.subr.bf16.mxu0 %v1118
  %1277 = vmatpush1.bf16.msra.mxu0 %v1117
  %1278 = vmatprep.subr.bf16.mxu0 %v1122
  %1279 = vmatpush1.bf16.msra.mxu0 %v1121
  %1280 = vmatprep.subr.bf16.mxu0 %v1126
  %1281 = vmatpush1.bf16.msra.mxu0 %v1125
  %1282 = vmatprep.subr.bf16.mxu0 %v1130
  %1283 = vmatpush1.bf16.msra.mxu0 %v1129
  %1284 = vmatprep.subr.bf16.mxu0 %v1134
  %1285 = vmatpush1.bf16.msra.mxu0 %v1133
  %1286 = vmatprep.subr.bf16.mxu0 %v1138
  %1287 = vmatpush1.bf16.msra.mxu0 %v1137
  %1288 = vmatprep.subr.bf16.mxu0 %v1142
  %1289 = vmatpush1.bf16.msra.mxu0 %v1141
  %1290 = vmatprep.subr.bf16.mxu0 %v1146
  %1291 = vmatpush1.bf16.msra.mxu0 %v1145
  %1292 = vmatprep.subr.bf16.mxu0 %v1150
  %1293 = vmatpush1.bf16.msra.mxu0 %v1149
  %1294 = vmatprep.subr.bf16.mxu0 %v1154
  %1295 = vmatpush1.bf16.msra.mxu0 %v1153
  %1296 = vmatprep.subr.bf16.mxu0 %v1158
  %1297 = vmatpush1.bf16.msra.mxu0 %v1157
  %1298 = vmatprep.subr.bf16.mxu0 %v1162
  %1299 = vmatpush1.bf16.msra.mxu0 %v1161
  %1300 = vmatprep.mubr.bf16.mxu0 %v820
  %1301 = vmatmul.mubr.bf16.gmra.mrb[0].mxu0 %v819
  %v1302 = vpop.f32.mrb[0].mxu0
  %v1303 = vadd.f32 %v898, %v1302
  %v1304 = vpop.f32.mrb[0].mxu0
  %v1305 = vadd.f32 %v902, %v1304
  %v1306 = vpop.f32.mrb[0].mxu0
  %v1307 = vpop.f32.mrb[0].mxu0
  %1308 = vdwg.mxu0
  %v1309 = vadd.f32 %v1262, %v1264
  %1310 = vadd.xlane.f32.xlu0 %v1309
  %v1311 = vpop.xlane.xlu0 %1310
  %v1312 = vmul.f32 %v1311, %v318
  %v1313 = vsub.f32 %v1262, %v1312
  %v1314 = vsub.f32 %v1264, %v1312
  %v1315 = vmul.f32 %v1313, %v1313
  %v1316 = vmul.f32 %v1314, %v1314
  %v1317 = vadd.f32 %v1315, %v1316
  %1318 = vadd.xlane.f32.xlu0 %v1317
  %v1319 = vpop.xlane.xlu0 %1318
  %v1320 = vmul.f32 %v1319, %v318
  %v1321 = vadd.f32 %v1320, 1e-05
  %v1322 = vrsqrt.pop %v1321
  %v1323 = vmul.f32 %v1313, %v1322
  %v1324 = vmul.f32 %v1314, %v1322
  %v1325 = vld [vmem:[%s3 + $0x16] sm:$0x3]
  %v1327 = vlaneseq
  %v1328 = vshrl.u32 %v1327, 7
  %v1329 = vsub.s32 0, %v1328
  %v1330 = vrot.slane %v1325, %v1329
  %v1331 = vlaneseq
  %v1332 = vshrl.u32 %v1331, 7
  %v1333 = vsub.s32 1, %v1332
  %v1334 = vrot.slane %v1325, %v1333
  %v1337 = vmul.f32 %v1323, %v1330
  %v1338 = vmul.f32 %v1324, %v1334
  %v1339 = vld [vmem:[%s3 + $0x18] sm:$0x3]
  %v1341 = vlaneseq
  %v1342 = vshrl.u32 %v1341, 7
  %v1343 = vsub.s32 0, %v1342
  %v1344 = vrot.slane %v1339, %v1343
  %v1345 = vlaneseq
  %v1346 = vshrl.u32 %v1345, 7
  %v1347 = vsub.s32 1, %v1346
  %v1348 = vrot.slane %v1339, %v1347
  %v1351 = vadd.f32 %v1337, %v1344
  %v1352 = vadd.f32 %v1338, %v1348
  %v1353 = vmax.f32 %v1351, 0.0
  %v1354 = vmax.f32 %v1352, 0.0
  %v1355 = vadd.f32 %v1303, %v1305
  %1356 = vadd.xlane.f32.xlu0 %v1355
  %v1357 = vpop.xlane.xlu0 %1356
  %v1358 = vmul.f32 %v1357, %v318
  %v1359 = vsub.f32 %v1303, %v1358
  %v1360 = vsub.f32 %v1305, %v1358
  %v1361 = vmul.f32 %v1359, %v1359
  %v1362 = vmul.f32 %v1360, %v1360
  %v1363 = vadd.f32 %v1361, %v1362
  %1364 = vadd.xlane.f32.xlu0 %v1363
  %v1365 = vpop.xlane.xlu0 %1364
  %v1366 = vmul.f32 %v1365, %v318
  %v1367 = vadd.f32 %v1366, 1e-05
  %v1368 = vrsqrt.pop %v1367
  %v1369 = vmul.f32 %v1359, %v1368
  %v1370 = vmul.f32 %v1360, %v1368
  %v1371 = vld [vmem:[%s3 + $0x1a] sm:$0x3]
  %v1373 = vlaneseq
  %v1374 = vshrl.u32 %v1373, 7
  %v1375 = vsub.s32 0, %v1374
  %v1376 = vrot.slane %v1371, %v1375
  %v1377 = vlaneseq
  %v1378 = vshrl.u32 %v1377, 7
  %v1379 = vsub.s32 1, %v1378
  %v1380 = vrot.slane %v1371, %v1379
  %v1383 = vmul.f32 %v1369, %v1376
  %v1384 = vmul.f32 %v1370, %v1380
  %v1385 = vld [vmem:[%s3 + $0x1c] sm:$0x3]
  %v1387 = vlaneseq
  %v1388 = vshrl.u32 %v1387, 7
  %v1389 = vsub.s32 0, %v1388
  %v1390 = vrot.slane %v1385, %v1389
  %v1391 = vlaneseq
  %v1392 = vshrl.u32 %v1391, 7
  %v1393 = vsub.s32 1, %v1392
  %v1394 = vrot.slane %v1385, %v1393
  %v1397 = vadd.f32 %v1383, %v1390
  %v1398 = vadd.f32 %v1384, %v1394
  %v1399 = vmax.f32 %v1397, 0.0
  %v1400 = vmax.f32 %v1398, 0.0
  %v1401 = vld [vmem:[%s2 + $0x18] sm:$0xff]
  %v1402 = vld [vmem:[%s2 + $0x48] sm:$0xff]
  %v1403 = vld [vmem:[%s2 + $0x78] sm:$0xff]
  %v1404 = vld [vmem:[%s2 + $0xa8] sm:$0xff]
  %v1405 = vld [vmem:[%s2 + $0xd8] sm:$0xff]
  %v1406 = vld [vmem:[%s2 + $0x108] sm:$0xff]
  %v1407 = vld [vmem:[%s2 + $0x138] sm:$0xff]
  %v1408 = vld [vmem:[%s2 + $0x168] sm:$0xff]
  %v1409 = vld [vmem:[%s2 + $0x198] sm:$0xff]
  %v1410 = vld [vmem:[%s2 + $0x1c8] sm:$0xff]
  %v1411 = vld [vmem:[%s2 + $0x1f8] sm:$0xff]
  %v1412 = vld [vmem:[%s2 + $0x228] sm:$0xff]
  %v1413 = vld [vmem:[%s2 + $0x258] sm:$0xff]
  %v1414 = vld [vmem:[%s2 + $0x288] sm:$0xff]
  %v1415 = vld [vmem:[%s2 + $0x2b8] sm:$0xff]
  %v1416 = vld [vmem:[%s2 + $0x2e8] sm:$0xff]
  %v1417 = vld [vmem:[%s2 + $0x318] sm:$0xff]
  %v1418 = vld [vmem:[%s2 + $0x348] sm:$0xff]
  %v1419 = vld [vmem:[%s2 + $0x378] sm:$0xff]
  %v1420 = vld [vmem:[%s2 + $0x3a8] sm:$0xff]
  %v1421 = vld [vmem:[%s2 + $0x3d8] sm:$0xff]
  %v1422 = vld [vmem:[%s2 + $0x408] sm:$0xff]
  %v1423 = vld [vmem:[%s2 + $0x438] sm:$0xff]
  %v1424 = vld [vmem:[%s2 + $0x468] sm:$0xff]
  %v1425 = vld [vmem:[%s2 + $0x498] sm:$0xff]
  %v1426 = vld [vmem:[%s2 + $0x4c8] sm:$0xff]
  %v1427 = vld [vmem:[%s2 + $0x4f8] sm:$0xff]
  %v1428 = vld [vmem:[%s2 + $0x528] sm:$0xff]
  %v1429 = vld [vmem:[%s2 + $0x558] sm:$0xff]
  %v1430 = vld [vmem:[%s2 + $0x588] sm:$0xff]
  %v1431 = vld [vmem:[%s2 + $0x5b8] sm:$0xff]
  %v1432 = vld [vmem:[%s2 + $0x5e8] sm:$0xff]
  %v1433 = vpack.c.bf16 %v1353, %v1353
  %v1434 = vpack.c.bf16 %v1354, %v1354
  %v1435 = vld [vmem:[%s3 + $0x1e] sm:$0x3]
  %v1437 = vlaneseq
  %v1438 = vshrl.u32 %v1437, 7
  %v1439 = vsub.s32 0, %v1438
  %v1440 = vrot.slane %v1435, %v1439
  %v1441 = vlaneseq
  %v1442 = vshrl.u32 %v1441, 7
  %v1443 = vsub.s32 1, %v1442
  %v1444 = vrot.slane %v1435, %v1443
  %v1479 = vunpack.c.l.b16 %v1401
  %v1480 = vunpack.c.h.b16 %v1401
  %v1481 = vunpack.c.l.b16 %v1402
  %v1482 = vunpack.c.h.b16 %v1402
  %v1483 = vunpack.c.l.b16 %v1403
  %v1484 = vunpack.c.h.b16 %v1403
  %v1485 = vunpack.c.l.b16 %v1404
  %v1486 = vunpack.c.h.b16 %v1404
  %v1487 = vunpack.c.l.b16 %v1405
  %v1488 = vunpack.c.h.b16 %v1405
  %v1489 = vunpack.c.l.b16 %v1406
  %v1490 = vunpack.c.h.b16 %v1406
  %v1491 = vunpack.c.l.b16 %v1407
  %v1492 = vunpack.c.h.b16 %v1407
  %v1493 = vunpack.c.l.b16 %v1408
  %v1494 = vunpack.c.h.b16 %v1408
  %v1495 = vunpack.c.l.b16 %v1409
  %v1496 = vunpack.c.h.b16 %v1409
  %v1497 = vunpack.c.l.b16 %v1410
  %v1498 = vunpack.c.h.b16 %v1410
  %v1499 = vunpack.c.l.b16 %v1411
  %v1500 = vunpack.c.h.b16 %v1411
  %v1501 = vunpack.c.l.b16 %v1412
  %v1502 = vunpack.c.h.b16 %v1412
  %v1503 = vunpack.c.l.b16 %v1413
  %v1504 = vunpack.c.h.b16 %v1413
  %v1505 = vunpack.c.l.b16 %v1414
  %v1506 = vunpack.c.h.b16 %v1414
  %v1507 = vunpack.c.l.b16 %v1415
  %v1508 = vunpack.c.h.b16 %v1415
  %v1509 = vunpack.c.l.b16 %v1416
  %v1510 = vunpack.c.h.b16 %v1416
  %v1511 = vunpack.c.l.b16 %v1417
  %v1512 = vunpack.c.h.b16 %v1417
  %v1513 = vunpack.c.l.b16 %v1418
  %v1514 = vunpack.c.h.b16 %v1418
  %v1515 = vunpack.c.l.b16 %v1419
  %v1516 = vunpack.c.h.b16 %v1419
  %v1517 = vunpack.c.l.b16 %v1420
  %v1518 = vunpack.c.h.b16 %v1420
  %v1519 = vunpack.c.l.b16 %v1421
  %v1520 = vunpack.c.h.b16 %v1421
  %v1521 = vunpack.c.l.b16 %v1422
  %v1522 = vunpack.c.h.b16 %v1422
  %v1523 = vunpack.c.l.b16 %v1423
  %v1524 = vunpack.c.h.b16 %v1423
  %v1525 = vunpack.c.l.b16 %v1424
  %v1526 = vunpack.c.h.b16 %v1424
  %v1527 = vunpack.c.l.b16 %v1425
  %v1528 = vunpack.c.h.b16 %v1425
  %v1529 = vunpack.c.l.b16 %v1426
  %v1530 = vunpack.c.h.b16 %v1426
  %v1531 = vunpack.c.l.b16 %v1427
  %v1532 = vunpack.c.h.b16 %v1427
  %v1533 = vunpack.c.l.b16 %v1428
  %v1534 = vunpack.c.h.b16 %v1428
  %v1535 = vunpack.c.l.b16 %v1429
  %v1536 = vunpack.c.h.b16 %v1429
  %v1537 = vunpack.c.l.b16 %v1430
  %v1538 = vunpack.c.h.b16 %v1430
  %v1539 = vunpack.c.l.b16 %v1431
  %v1540 = vunpack.c.h.b16 %v1431
  %v1541 = vunpack.c.l.b16 %v1432
  %v1542 = vunpack.c.h.b16 %v1432
  %v1543 = vpack.c.b16 %v1481, %v1479
  %v1544 = vpack.c.b16 %v1482, %v1480
  %v1545 = vpack.c.b16 %v1485, %v1483
  %v1546 = vpack.c.b16 %v1486, %v1484
  %v1547 = vpack.c.b16 %v1489, %v1487
  %v1548 = vpack.c.b16 %v1490, %v1488
  %v1549 = vpack.c.b16 %v1493, %v1491
  %v1550 = vpack.c.b16 %v1494, %v1492
  %v1551 = vpack.c.b16 %v1497, %v1495
  %v1552 = vpack.c.b16 %v1498, %v1496
  %v1553 = vpack.c.b16 %v1501, %v1499
  %v1554 = vpack.c.b16 %v1502, %v1500
  %v1555 = vpack.c.b16 %v1505, %v1503
  %v1556 = vpack.c.b16 %v1506, %v1504
  %v1557 = vpack.c.b16 %v1509, %v1507
  %v1558 = vpack.c.b16 %v1510, %v1508
  %v1559 = vpack.c.b16 %v1513, %v1511
  %v1560 = vpack.c.b16 %v1514, %v1512
  %v1561 = vpack.c.b16 %v1517, %v1515
  %v1562 = vpack.c.b16 %v1518, %v1516
  %v1563 = vpack.c.b16 %v1521, %v1519
  %v1564 = vpack.c.b16 %v1522, %v1520
  %v1565 = vpack.c.b16 %v1525, %v1523
  %v1566 = vpack.c.b16 %v1526, %v1524
  %v1567 = vpack.c.b16 %v1529, %v1527
  %v1568 = vpack.c.b16 %v1530, %v1528
  %v1569 = vpack.c.b16 %v1533, %v1531
  %v1570 = vpack.c.b16 %v1534, %v1532
  %v1571 = vpack.c.b16 %v1537, %v1535
  %v1572 = vpack.c.b16 %v1538, %v1536
  %v1573 = vpack.c.b16 %v1541, %v1539
  %v1574 = vpack.c.b16 %v1542, %v1540
  %1607 = vmatprep.subr.bf16.mxu0 %v1544
  %1608 = vmatpush1.bf16.msra.mxu0 %v1543
  %1609 = vmatprep.subr.bf16.mxu0 %v1546
  %1610 = vmatpush1.bf16.msra.mxu0 %v1545
  %1611 = vmatprep.subr.bf16.mxu0 %v1548
  %1612 = vmatpush1.bf16.msra.mxu0 %v1547
  %1613 = vmatprep.subr.bf16.mxu0 %v1550
  %1614 = vmatpush1.bf16.msra.mxu0 %v1549
  %1615 = vmatprep.subr.bf16.mxu0 %v1552
  %1616 = vmatpush1.bf16.msra.mxu0 %v1551
  %1617 = vmatprep.subr.bf16.mxu0 %v1554
  %1618 = vmatpush1.bf16.msra.mxu0 %v1553
  %1619 = vmatprep.subr.bf16.mxu0 %v1556
  %1620 = vmatpush1.bf16.msra.mxu0 %v1555
  %1621 = vmatprep.subr.bf16.mxu0 %v1558
  %1622 = vmatpush1.bf16.msra.mxu0 %v1557
  %1623 = vmatprep.subr.bf16.mxu0 %v1560
  %1624 = vmatpush1.bf16.msra.mxu0 %v1559
  %1625 = vmatprep.subr.bf16.mxu0 %v1562
  %1626 = vmatpush1.bf16.msra.mxu0 %v1561
  %1627 = vmatprep.subr.bf16.mxu0 %v1564
  %1628 = vmatpush1.bf16.msra.mxu0 %v1563
  %1629 = vmatprep.subr.bf16.mxu0 %v1566
  %1630 = vmatpush1.bf16.msra.mxu0 %v1565
  %1631 = vmatprep.subr.bf16.mxu0 %v1568
  %1632 = vmatpush1.bf16.msra.mxu0 %v1567
  %1633 = vmatprep.subr.bf16.mxu0 %v1570
  %1634 = vmatpush1.bf16.msra.mxu0 %v1569
  %1635 = vmatprep.subr.bf16.mxu0 %v1572
  %1636 = vmatpush1.bf16.msra.mxu0 %v1571
  %1637 = vmatprep.subr.bf16.mxu0 %v1574
  %1638 = vmatpush1.bf16.msra.mxu0 %v1573
  %1639 = vmatprep.mubr.bf16.mxu0 %v1434
  %1640 = vmatmul.mubr.bf16.gmra.mrb[0].mxu0 %v1433
  %v1641 = vpop.f32.mrb[0].mxu0
  %v1642 = vadd.f32 %v1440, %v1641
  %v1643 = vpop.f32.mrb[0].mxu0
  %v1644 = vadd.f32 %v1444, %v1643
  %v1645 = vpop.f32.mrb[0].mxu0
  %v1646 = vpop.f32.mrb[0].mxu0
  %1647 = vdwg.mxu0
  %v1648 = vadd.f32 %v1642, %v1644
  %1649 = vadd.xlane.f32.xlu0 %v1648
  %v1650 = vpop.xlane.xlu0 %1649
  %v1651 = vmul.f32 %v1650, %v318
  %v1652 = vsub.f32 %v1642, %v1651
  %v1653 = vsub.f32 %v1644, %v1651
  %v1654 = vmul.f32 %v1652, %v1652
  %v1655 = vmul.f32 %v1653, %v1653
  %v1656 = vadd.f32 %v1654, %v1655
  %1657 = vadd.xlane.f32.xlu0 %v1656
  %v1658 = vpop.xlane.xlu0 %1657
  %v1659 = vmul.f32 %v1658, %v318
  %v1660 = vadd.f32 %v1659, 1e-05
  %v1661 = vrsqrt.pop %v1660
  %v1662 = vmul.f32 %v1652, %v1661
  %v1663 = vmul.f32 %v1653, %v1661
  %v1664 = vld [vmem:[%s3 + $0x20] sm:$0x3]
  %v1666 = vlaneseq
  %v1667 = vshrl.u32 %v1666, 7
  %v1668 = vsub.s32 0, %v1667
  %v1669 = vrot.slane %v1664, %v1668
  %v1670 = vlaneseq
  %v1671 = vshrl.u32 %v1670, 7
  %v1672 = vsub.s32 1, %v1671
  %v1673 = vrot.slane %v1664, %v1672
  %v1676 = vmul.f32 %v1662, %v1669
  %v1677 = vmul.f32 %v1663, %v1673
  %v1678 = vld [vmem:[%s3 + $0x22] sm:$0x3]
  %v1680 = vlaneseq
  %v1681 = vshrl.u32 %v1680, 7
  %v1682 = vsub.s32 0, %v1681
  %v1683 = vrot.slane %v1678, %v1682
  %v1684 = vlaneseq
  %v1685 = vshrl.u32 %v1684, 7
  %v1686 = vsub.s32 1, %v1685
  %v1687 = vrot.slane %v1678, %v1686
  %v1690 = vadd.f32 %v1676, %v1683
  %v1691 = vadd.f32 %v1677, %v1687
  %v1692 = vmax.f32 %v1690, 0.0
  %v1693 = vmax.f32 %v1691, 0.0
  %v1694 = vld [vmem:[%s2 + $0x20] sm:$0xff]
  %v1695 = vld [vmem:[%s2 + $0x50] sm:$0xff]
  %v1696 = vld [vmem:[%s2 + $0x80] sm:$0xff]
  %v1697 = vld [vmem:[%s2 + $0xb0] sm:$0xff]
  %v1698 = vld [vmem:[%s2 + $0xe0] sm:$0xff]
  %v1699 = vld [vmem:[%s2 + $0x110] sm:$0xff]
  %v1700 = vld [vmem:[%s2 + $0x140] sm:$0xff]
  %v1701 = vld [vmem:[%s2 + $0x170] sm:$0xff]
  %v1702 = vld [vmem:[%s2 + $0x1a0] sm:$0xff]
  %v1703 = vld [vmem:[%s2 + $0x1d0] sm:$0xff]
  %v1704 = vld [vmem:[%s2 + $0x200] sm:$0xff]
  %v1705 = vld [vmem:[%s2 + $0x230] sm:$0xff]
  %v1706 = vld [vmem:[%s2 + $0x260] sm:$0xff]
  %v1707 = vld [vmem:[%s2 + $0x290] sm:$0xff]
  %v1708 = vld [vmem:[%s2 + $0x2c0] sm:$0xff]
  %v1709 = vld [vmem:[%s2 + $0x2f0] sm:$0xff]
  %v1710 = vld [vmem:[%s2 + $0x320] sm:$0xff]
  %v1711 = vld [vmem:[%s2 + $0x350] sm:$0xff]
  %v1712 = vld [vmem:[%s2 + $0x380] sm:$0xff]
  %v1713 = vld [vmem:[%s2 + $0x3b0] sm:$0xff]
  %v1714 = vld [vmem:[%s2 + $0x3e0] sm:$0xff]
  %v1715 = vld [vmem:[%s2 + $0x410] sm:$0xff]
  %v1716 = vld [vmem:[%s2 + $0x440] sm:$0xff]
  %v1717 = vld [vmem:[%s2 + $0x470] sm:$0xff]
  %v1718 = vld [vmem:[%s2 + $0x4a0] sm:$0xff]
  %v1719 = vld [vmem:[%s2 + $0x4d0] sm:$0xff]
  %v1720 = vld [vmem:[%s2 + $0x500] sm:$0xff]
  %v1721 = vld [vmem:[%s2 + $0x530] sm:$0xff]
  %v1722 = vld [vmem:[%s2 + $0x560] sm:$0xff]
  %v1723 = vld [vmem:[%s2 + $0x590] sm:$0xff]
  %v1724 = vld [vmem:[%s2 + $0x5c0] sm:$0xff]
  %v1725 = vld [vmem:[%s2 + $0x5f0] sm:$0xff]
  %v1726 = vpack.c.bf16 %v1399, %v1399
  %v1727 = vpack.c.bf16 %v1400, %v1400
  %v1728 = vld [vmem:[%s3 + $0x24] sm:$0x3]
  %v1730 = vlaneseq
  %v1731 = vshrl.u32 %v1730, 7
  %v1732 = vsub.s32 0, %v1731
  %v1733 = vrot.slane %v1728, %v1732
  %v1734 = vlaneseq
  %v1735 = vshrl.u32 %v1734, 7
  %v1736 = vsub.s32 1, %v1735
  %v1737 = vrot.slane %v1728, %v1736
  %v1772 = vunpack.c.l.b16 %v1694
  %v1773 = vunpack.c.h.b16 %v1694
  %v1774 = vunpack.c.l.b16 %v1695
  %v1775 = vunpack.c.h.b16 %v1695
  %v1776 = vunpack.c.l.b16 %v1696
  %v1777 = vunpack.c.h.b16 %v1696
  %v1778 = vunpack.c.l.b16 %v1697
  %v1779 = vunpack.c.h.b16 %v1697
  %v1780 = vunpack.c.l.b16 %v1698
  %v1781 = vunpack.c.h.b16 %v1698
  %v1782 = vunpack.c.l.b16 %v1699
  %v1783 = vunpack.c.h.b16 %v1699
  %v1784 = vunpack.c.l.b16 %v1700
  %v1785 = vunpack.c.h.b16 %v1700
  %v1786 = vunpack.c.l.b16 %v1701
  %v1787 = vunpack.c.h.b16 %v1701
  %v1788 = vunpack.c.l.b16 %v1702
  %v1789 = vunpack.c.h.b16 %v1702
  %v1790 = vunpack.c.l.b16 %v1703
  %v1791 = vunpack.c.h.b16 %v1703
  %v1792 = vunpack.c.l.b16 %v1704
  %v1793 = vunpack.c.h.b16 %v1704
  %v1794 = vunpack.c.l.b16 %v1705
  %v1795 = vunpack.c.h.b16 %v1705
  %v1796 = vunpack.c.l.b16 %v1706
  %v1797 = vunpack.c.h.b16 %v1706
  %v1798 = vunpack.c.l.b16 %v1707
  %v1799 = vunpack.c.h.b16 %v1707
  %v1800 = vunpack.c.l.b16 %v1708
  %v1801 = vunpack.c.h.b16 %v1708
  %v1802 = vunpack.c.l.b16 %v1709
  %v1803 = vunpack.c.h.b16 %v1709
  %v1804 = vunpack.c.l.b16 %v1710
  %v1805 = vunpack.c.h.b16 %v1710
  %v1806 = vunpack.c.l.b16 %v1711
  %v1807 = vunpack.c.h.b16 %v1711
  %v1808 = vunpack.c.l.b16 %v1712
  %v1809 = vunpack.c.h.b16 %v1712
  %v1810 = vunpack.c.l.b16 %v1713
  %v1811 = vunpack.c.h.b16 %v1713
  %v1812 = vunpack.c.l.b16 %v1714
  %v1813 = vunpack.c.h.b16 %v1714
  %v1814 = vunpack.c.l.b16 %v1715
  %v1815 = vunpack.c.h.b16 %v1715
  %v1816 = vunpack.c.l.b16 %v1716
  %v1817 = vunpack.c.h.b16 %v1716
  %v1818 = vunpack.c.l.b16 %v1717
  %v1819 = vunpack.c.h.b16 %v1717
  %v1820 = vunpack.c.l.b16 %v1718
  %v1821 = vunpack.c.h.b16 %v1718
  %v1822 = vunpack.c.l.b16 %v1719
  %v1823 = vunpack.c.h.b16 %v1719
  %v1824 = vunpack.c.l.b16 %v1720
  %v1825 = vunpack.c.h.b16 %v1720
  %v1826 = vunpack.c.l.b16 %v1721
  %v1827 = vunpack.c.h.b16 %v1721
  %v1828 = vunpack.c.l.b16 %v1722
  %v1829 = vunpack.c.h.b16 %v1722
  %v1830 = vunpack.c.l.b16 %v1723
  %v1831 = vunpack.c.h.b16 %v1723
  %v1832 = vunpack.c.l.b16 %v1724
  %v1833 = vunpack.c.h.b16 %v1724
  %v1834 = vunpack.c.l.b16 %v1725
  %v1835 = vunpack.c.h.b16 %v1725
  %v1836 = vpack.c.b16 %v1774, %v1772
  %v1837 = vpack.c.b16 %v1775, %v1773
  %v1838 = vpack.c.b16 %v1778, %v1776
  %v1839 = vpack.c.b16 %v1779, %v1777
  %v1840 = vpack.c.b16 %v1782, %v1780
  %v1841 = vpack.c.b16 %v1783, %v1781
  %v1842 = vpack.c.b16 %v1786, %v1784
  %v1843 = vpack.c.b16 %v1787, %v1785
  %v1844 = vpack.c.b16 %v1790, %v1788
  %v1845 = vpack.c.b16 %v1791, %v1789
  %v1846 = vpack.c.b16 %v1794, %v1792
  %v1847 = vpack.c.b16 %v1795, %v1793
  %v1848 = vpack.c.b16 %v1798, %v1796
  %v1849 = vpack.c.b16 %v1799, %v1797
  %v1850 = vpack.c.b16 %v1802, %v1800
  %v1851 = vpack.c.b16 %v1803, %v1801
  %v1852 = vpack.c.b16 %v1806, %v1804
  %v1853 = vpack.c.b16 %v1807, %v1805
  %v1854 = vpack.c.b16 %v1810, %v1808
  %v1855 = vpack.c.b16 %v1811, %v1809
  %v1856 = vpack.c.b16 %v1814, %v1812
  %v1857 = vpack.c.b16 %v1815, %v1813
  %v1858 = vpack.c.b16 %v1818, %v1816
  %v1859 = vpack.c.b16 %v1819, %v1817
  %v1860 = vpack.c.b16 %v1822, %v1820
  %v1861 = vpack.c.b16 %v1823, %v1821
  %v1862 = vpack.c.b16 %v1826, %v1824
  %v1863 = vpack.c.b16 %v1827, %v1825
  %v1864 = vpack.c.b16 %v1830, %v1828
  %v1865 = vpack.c.b16 %v1831, %v1829
  %v1866 = vpack.c.b16 %v1834, %v1832
  %v1867 = vpack.c.b16 %v1835, %v1833
  %1900 = vmatprep.subr.bf16.mxu0 %v1837
  %1901 = vmatpush1.bf16.msra.mxu0 %v1836
  %1902 = vmatprep.subr.bf16.mxu0 %v1839
  %1903 = vmatpush1.bf16.msra.mxu0 %v1838
  %1904 = vmatprep.subr.bf16.mxu0 %v1841
  %1905 = vmatpush1.bf16.msra.mxu0 %v1840
  %1906 = vmatprep.subr.bf16.mxu0 %v1843
  %1907 = vmatpush1.bf16.msra.mxu0 %v1842
  %1908 = vmatprep.subr.bf16.mxu0 %v1845
  %1909 = vmatpush1.bf16.msra.mxu0 %v1844
  %1910 = vmatprep.subr.bf16.mxu0 %v1847
  %1911 = vmatpush1.bf16.msra.mxu0 %v1846
  %1912 = vmatprep.subr.bf16.mxu0 %v1849
  %1913 = vmatpush1.bf16.msra.mxu0 %v1848
  %1914 = vmatprep.subr.bf16.mxu0 %v1851
  %1915 = vmatpush1.bf16.msra.mxu0 %v1850
  %1916 = vmatprep.subr.bf16.mxu0 %v1853
  %1917 = vmatpush1.bf16.msra.mxu0 %v1852
  %1918 = vmatprep.subr.bf16.mxu0 %v1855
  %1919 = vmatpush1.bf16.msra.mxu0 %v1854
  %1920 = vmatprep.subr.bf16.mxu0 %v1857
  %1921 = vmatpush1.bf16.msra.mxu0 %v1856
  %1922 = vmatprep.subr.bf16.mxu0 %v1859
  %1923 = vmatpush1.bf16.msra.mxu0 %v1858
  %1924 = vmatprep.subr.bf16.mxu0 %v1861
  %1925 = vmatpush1.bf16.msra.mxu0 %v1860
  %1926 = vmatprep.subr.bf16.mxu0 %v1863
  %1927 = vmatpush1.bf16.msra.mxu0 %v1862
  %1928 = vmatprep.subr.bf16.mxu0 %v1865
  %1929 = vmatpush1.bf16.msra.mxu0 %v1864
  %1930 = vmatprep.subr.bf16.mxu0 %v1867
  %1931 = vmatpush1.bf16.msra.mxu0 %v1866
  %1932 = vmatprep.mubr.bf16.mxu0 %v1727
  %1933 = vmatmul.mubr.bf16.gmra.mrb[0].mxu0 %v1726
  %v1934 = vpop.f32.mrb[0].mxu0
  %v1935 = vadd.f32 %v1733, %v1934
  %v1936 = vpop.f32.mrb[0].mxu0
  %v1937 = vadd.f32 %v1737, %v1936
  %v1938 = vpop.f32.mrb[0].mxu0
  %v1939 = vpop.f32.mrb[0].mxu0
  %1940 = vdwg.mxu0
  %v1941 = vadd.f32 %v1935, %v1937
  %1942 = vadd.xlane.f32.xlu0 %v1941
  %v1943 = vpop.xlane.xlu0 %1942
  %v1944 = vmul.f32 %v1943, %v318
  %v1945 = vsub.f32 %v1935, %v1944
  %v1946 = vsub.f32 %v1937, %v1944
  %v1947 = vmul.f32 %v1945, %v1945
  %v1948 = vmul.f32 %v1946, %v1946
  %v1949 = vadd.f32 %v1947, %v1948
  %1950 = vadd.xlane.f32.xlu0 %v1949
  %v1951 = vpop.xlane.xlu0 %1950
  %v1952 = vmul.f32 %v1951, %v318
  %v1953 = vadd.f32 %v1952, 1e-05
  %v1954 = vrsqrt.pop %v1953
  %v1955 = vmul.f32 %v1945, %v1954
  %v1956 = vmul.f32 %v1946, %v1954
  %v1957 = vld [vmem:[%s3 + $0x26] sm:$0x3]
  %v1959 = vlaneseq
  %v1960 = vshrl.u32 %v1959, 7
  %v1961 = vsub.s32 0, %v1960
  %v1962 = vrot.slane %v1957, %v1961
  %v1963 = vlaneseq
  %v1964 = vshrl.u32 %v1963, 7
  %v1965 = vsub.s32 1, %v1964
  %v1966 = vrot.slane %v1957, %v1965
  %v1969 = vmul.f32 %v1955, %v1962
  %v1970 = vmul.f32 %v1956, %v1966
  %v1971 = vld [vmem:[%s3 + $0x28] sm:$0x3]
  %v1973 = vlaneseq
  %v1974 = vshrl.u32 %v1973, 7
  %v1975 = vsub.s32 0, %v1974
  %v1976 = vrot.slane %v1971, %v1975
  %v1977 = vlaneseq
  %v1978 = vshrl.u32 %v1977, 7
  %v1979 = vsub.s32 1, %v1978
  %v1980 = vrot.slane %v1971, %v1979
  %v1983 = vadd.f32 %v1969, %v1976
  %v1984 = vadd.f32 %v1970, %v1980
  %v1985 = vmax.f32 %v1983, 0.0
  %v1986 = vmax.f32 %v1984, 0.0
  %v1987 = vld [vmem:[%s2 + $0x28] sm:$0xf]
  %v1988 = vld [vmem:[%s2 + $0x58] sm:$0xf]
  %v1989 = vld [vmem:[%s2 + $0x88] sm:$0xf]
  %v1990 = vld [vmem:[%s2 + $0xb8] sm:$0xf]
  %v1991 = vld [vmem:[%s2 + $0xe8] sm:$0xf]
  %v1992 = vld [vmem:[%s2 + $0x118] sm:$0xf]
  %v1993 = vld [vmem:[%s2 + $0x148] sm:$0xf]
  %v1994 = vld [vmem:[%s2 + $0x178] sm:$0xf]
  %v1995 = vld [vmem:[%s2 + $0x1a8] sm:$0xf]
  %v1996 = vld [vmem:[%s2 + $0x1d8] sm:$0xf]
  %v1997 = vld [vmem:[%s2 + $0x208] sm:$0xf]
  %v1998 = vld [vmem:[%s2 + $0x238] sm:$0xf]
  %v1999 = vld [vmem:[%s2 + $0x268] sm:$0xf]
  %v2000 = vld [vmem:[%s2 + $0x298] sm:$0xf]
  %v2001 = vld [vmem:[%s2 + $0x2c8] sm:$0xf]
  %v2002 = vld [vmem:[%s2 + $0x2f8] sm:$0xf]
  %v2003 = vld [vmem:[%s2 + $0x328] sm:$0xf]
  %v2004 = vld [vmem:[%s2 + $0x358] sm:$0xf]
  %v2005 = vld [vmem:[%s2 + $0x388] sm:$0xf]
  %v2006 = vld [vmem:[%s2 + $0x3b8] sm:$0xf]
  %v2007 = vld [vmem:[%s2 + $0x3e8] sm:$0xf]
  %v2008 = vld [vmem:[%s2 + $0x418] sm:$0xf]
  %v2009 = vld [vmem:[%s2 + $0x448] sm:$0xf]
  %v2010 = vld [vmem:[%s2 + $0x478] sm:$0xf]
  %v2011 = vld [vmem:[%s2 + $0x4a8] sm:$0xf]
  %v2012 = vld [vmem:[%s2 + $0x4d8] sm:$0xf]
  %v2013 = vld [vmem:[%s2 + $0x508] sm:$0xf]
  %v2014 = vld [vmem:[%s2 + $0x538] sm:$0xf]
  %v2015 = vld [vmem:[%s2 + $0x568] sm:$0xf]
  %v2016 = vld [vmem:[%s2 + $0x598] sm:$0xf]
  %v2017 = vld [vmem:[%s2 + $0x5c8] sm:$0xf]
  %v2018 = vld [vmem:[%s2 + $0x5f8] sm:$0xf]
  %v2019 = vpack.c.bf16 %v1692, %v1692
  %v2020 = vpack.c.bf16 %v1693, %v1693
  %v2021 = vld [vmem:[%s2 + $0x2c] sm:$0xf]
  %v2022 = vld [vmem:[%s2 + $0x5c] sm:$0xf]
  %v2023 = vld [vmem:[%s2 + $0x8c] sm:$0xf]
  %v2024 = vld [vmem:[%s2 + $0xbc] sm:$0xf]
  %v2025 = vld [vmem:[%s2 + $0xec] sm:$0xf]
  %v2026 = vld [vmem:[%s2 + $0x11c] sm:$0xf]
  %v2027 = vld [vmem:[%s2 + $0x14c] sm:$0xf]
  %v2028 = vld [vmem:[%s2 + $0x17c] sm:$0xf]
  %v2029 = vld [vmem:[%s2 + $0x1ac] sm:$0xf]
  %v2030 = vld [vmem:[%s2 + $0x1dc] sm:$0xf]
  %v2031 = vld [vmem:[%s2 + $0x20c] sm:$0xf]
  %v2032 = vld [vmem:[%s2 + $0x23c] sm:$0xf]
  %v2033 = vld [vmem:[%s2 + $0x26c] sm:$0xf]
  %v2034 = vld [vmem:[%s2 + $0x29c] sm:$0xf]
  %v2035 = vld [vmem:[%s2 + $0x2cc] sm:$0xf]
  %v2036 = vld [vmem:[%s2 + $0x2fc] sm:$0xf]
  %v2037 = vld [vmem:[%s2 + $0x32c] sm:$0xf]
  %v2038 = vld [vmem:[%s2 + $0x35c] sm:$0xf]
  %v2039 = vld [vmem:[%s2 + $0x38c] sm:$0xf]
  %v2040 = vld [vmem:[%s2 + $0x3bc] sm:$0xf]
  %v2041 = vld [vmem:[%s2 + $0x3ec] sm:$0xf]
  %v2042 = vld [vmem:[%s2 + $0x41c] sm:$0xf]
  %v2043 = vld [vmem:[%s2 + $0x44c] sm:$0xf]
  %v2044 = vld [vmem:[%s2 + $0x47c] sm:$0xf]
  %v2045 = vld [vmem:[%s2 + $0x4ac] sm:$0xf]
  %v2046 = vld [vmem:[%s2 + $0x4dc] sm:$0xf]
  %v2047 = vld [vmem:[%s2 + $0x50c] sm:$0xf]
  %v2048 = vld [vmem:[%s2 + $0x53c] sm:$0xf]
  %v2049 = vld [vmem:[%s2 + $0x56c] sm:$0xf]
  %v2050 = vld [vmem:[%s2 + $0x59c] sm:$0xf]
  %v2051 = vld [vmem:[%s2 + $0x5cc] sm:$0xf]
  %v2052 = vld [vmem:[%s2 + $0x5fc] sm:$0xf]
  %v2053 = vpack.c.bf16 %v1985, %v1985
  %v2054 = vpack.c.bf16 %v1986, %v1986
  %v2087 = vunpack.c.l.b16 %v2021
  %v2088 = vunpack.c.l.b16 %v2022
  %v2089 = vunpack.c.l.b16 %v2023
  %v2090 = vunpack.c.l.b16 %v2024
  %v2091 = vunpack.c.l.b16 %v2025
  %v2092 = vunpack.c.l.b16 %v2026
  %v2093 = vunpack.c.l.b16 %v2027
  %v2094 = vunpack.c.l.b16 %v2028
  %v2095 = vunpack.c.l.b16 %v2029
  %v2096 = vunpack.c.l.b16 %v2030
  %v2097 = vunpack.c.l.b16 %v2031
  %v2098 = vunpack.c.l.b16 %v2032
  %v2099 = vunpack.c.l.b16 %v2033
  %v2100 = vunpack.c.l.b16 %v2034
  %v2101 = vunpack.c.l.b16 %v2035
  %v2102 = vunpack.c.l.b16 %v2036
  %v2103 = vunpack.c.l.b16 %v2037
  %v2104 = vunpack.c.l.b16 %v2038
  %v2105 = vunpack.c.l.b16 %v2039
  %v2106 = vunpack.c.l.b16 %v2040
  %v2107 = vunpack.c.l.b16 %v2041
  %v2108 = vunpack.c.l.b16 %v2042
  %v2109 = vunpack.c.l.b16 %v2043
  %v2110 = vunpack.c.l.b16 %v2044
  %v2111 = vunpack.c.l.b16 %v2045
  %v2112 = vunpack.c.l.b16 %v2046
  %v2113 = vunpack.c.l.b16 %v2047
  %v2114 = vunpack.c.l.b16 %v2048
  %v2115 = vunpack.c.l.b16 %v2049
  %v2116 = vunpack.c.l.b16 %v2050
  %v2117 = vunpack.c.l.b16 %v2051
  %v2118 = vunpack.c.l.b16 %v2052
  %v2119 = vpack.c.b16 %v2088, %v2087
  %v2120 = vpack.c.b16 %v2090, %v2089
  %v2121 = vpack.c.b16 %v2092, %v2091
  %v2122 = vpack.c.b16 %v2094, %v2093
  %v2123 = vpack.c.b16 %v2096, %v2095
  %v2124 = vpack.c.b16 %v2098, %v2097
  %v2125 = vpack.c.b16 %v2100, %v2099
  %v2126 = vpack.c.b16 %v2102, %v2101
  %v2127 = vpack.c.b16 %v2104, %v2103
  %v2128 = vpack.c.b16 %v2106, %v2105
  %v2129 = vpack.c.b16 %v2108, %v2107
  %v2130 = vpack.c.b16 %v2110, %v2109
  %v2131 = vpack.c.b16 %v2112, %v2111
  %v2132 = vpack.c.b16 %v2114, %v2113
  %v2133 = vpack.c.b16 %v2116, %v2115
  %v2134 = vpack.c.b16 %v2118, %v2117
  %2151 = vmatprep.subr.bf16.mxu0 0
  %2152 = vmatpush1.bf16.msra.mxu0 %v2119
  %2153 = vmatprep.subr.bf16.mxu0 0
  %2154 = vmatpush1.bf16.msra.mxu0 %v2120
  %2155 = vmatprep.subr.bf16.mxu0 0
  %2156 = vmatpush1.bf16.msra.mxu0 %v2121
  %2157 = vmatprep.subr.bf16.mxu0 0
  %2158 = vmatpush1.bf16.msra.mxu0 %v2122
  %2159 = vmatprep.subr.bf16.mxu0 0
  %2160 = vmatpush1.bf16.msra.mxu0 %v2123
  %2161 = vmatprep.subr.bf16.mxu0 0
  %2162 = vmatpush1.bf16.msra.mxu0 %v2124
  %2163 = vmatprep.subr.bf16.mxu0 0
  %2164 = vmatpush1.bf16.msra.mxu0 %v2125
  %2165 = vmatprep.subr.bf16.mxu0 0
  %2166 = vmatpush1.bf16.msra.mxu0 %v2126
  %2167 = vmatprep.subr.bf16.mxu0 0
  %2168 = vmatpush1.bf16.msra.mxu0 %v2127
  %2169 = vmatprep.subr.bf16.mxu0 0
  %2170 = vmatpush1.bf16.msra.mxu0 %v2128
  %2171 = vmatprep.subr.bf16.mxu0 0
  %2172 = vmatpush1.bf16.msra.mxu0 %v2129
  %2173 = vmatprep.subr.bf16.mxu0 0
  %2174 = vmatpush1.bf16.msra.mxu0 %v2130
  %2175 = vmatprep.subr.bf16.mxu0 0
  %2176 = vmatpush1.bf16.msra.mxu0 %v2131
  %2177 = vmatprep.subr.bf16.mxu0 0
  %2178 = vmatpush1.bf16.msra.mxu0 %v2132
  %2179 = vmatprep.subr.bf16.mxu0 0
  %2180 = vmatpush1.bf16.msra.mxu0 %v2133
  %2181 = vmatprep.subr.bf16.mxu0 0
  %2182 = vmatpush1.bf16.msra.mxu0 %v2134
  %2183 = vmatprep.mubr.bf16.mxu0 %v2054
  %2184 = vmatmul.mubr.bf16.gmra.mrb[0].mxu0 %v2053
  %v2185 = vpop.f32.mrb[0].mxu0
  %v2186 = vadd.f32 0.0, %v2185
  %v2187 = vpop.f32.mrb[0].mxu0
  %v2188 = vpop.f32.mrb[0].mxu0
  %v2189 = vpop.f32.mrb[0].mxu0
  %2190 = vdwg.mxu0
  %v2223 = vunpack.c.l.b16 %v1987
  %v2224 = vunpack.c.l.b16 %v1988
  %v2225 = vunpack.c.l.b16 %v1989
  %v2226 = vunpack.c.l.b16 %v1990
  %v2227 = vunpack.c.l.b16 %v1991
  %v2228 = vunpack.c.l.b16 %v1992
  %v2229 = vunpack.c.l.b16 %v1993
  %v2230 = vunpack.c.l.b16 %v1994
  %v2231 = vunpack.c.l.b16 %v1995
  %v2232 = vunpack.c.l.b16 %v1996
  %v2233 = vunpack.c.l.b16 %v1997
  %v2234 = vunpack.c.l.b16 %v1998
  %v2235 = vunpack.c.l.b16 %v1999
  %v2236 = vunpack.c.l.b16 %v2000
  %v2237 = vunpack.c.l.b16 %v2001
  %v2238 = vunpack.c.l.b16 %v2002
  %v2239 = vunpack.c.l.b16 %v2003
  %v2240 = vunpack.c.l.b16 %v2004
  %v2241 = vunpack.c.l.b16 %v2005
  %v2242 = vunpack.c.l.b16 %v2006
  %v2243 = vunpack.c.l.b16 %v2007
  %v2244 = vunpack.c.l.b16 %v2008
  %v2245 = vunpack.c.l.b16 %v2009
  %v2246 = vunpack.c.l.b16 %v2010
  %v2247 = vunpack.c.l.b16 %v2011
  %v2248 = vunpack.c.l.b16 %v2012
  %v2249 = vunpack.c.l.b16 %v2013
  %v2250 = vunpack.c.l.b16 %v2014
  %v2251 = vunpack.c.l.b16 %v2015
  %v2252 = vunpack.c.l.b16 %v2016
  %v2253 = vunpack.c.l.b16 %v2017
  %v2254 = vunpack.c.l.b16 %v2018
  %v2255 = vpack.c.b16 %v2224, %v2223
  %v2256 = vpack.c.b16 %v2226, %v2225
  %v2257 = vpack.c.b16 %v2228, %v2227
  %v2258 = vpack.c.b16 %v2230, %v2229
  %v2259 = vpack.c.b16 %v2232, %v2231
  %v2260 = vpack.c.b16 %v2234, %v2233
  %v2261 = vpack.c.b16 %v2236, %v2235
  %v2262 = vpack.c.b16 %v2238, %v2237
  %v2263 = vpack.c.b16 %v2240, %v2239
  %v2264 = vpack.c.b16 %v2242, %v2241
  %v2265 = vpack.c.b16 %v2244, %v2243
  %v2266 = vpack.c.b16 %v2246, %v2245
  %v2267 = vpack.c.b16 %v2248, %v2247
  %v2268 = vpack.c.b16 %v2250, %v2249
  %v2269 = vpack.c.b16 %v2252, %v2251
  %v2270 = vpack.c.b16 %v2254, %v2253
  %2287 = vmatprep.subr.bf16.mxu0 0
  %2288 = vmatpush1.bf16.msra.mxu0 %v2255
  %2289 = vmatprep.subr.bf16.mxu0 0
  %2290 = vmatpush1.bf16.msra.mxu0 %v2256
  %2291 = vmatprep.subr.bf16.mxu0 0
  %2292 = vmatpush1.bf16.msra.mxu0 %v2257
  %2293 = vmatprep.subr.bf16.mxu0 0
  %2294 = vmatpush1.bf16.msra.mxu0 %v2258
  %2295 = vmatprep.subr.bf16.mxu0 0
  %2296 = vmatpush1.bf16.msra.mxu0 %v2259
  %2297 = vmatprep.subr.bf16.mxu0 0
  %2298 = vmatpush1.bf16.msra.mxu0 %v2260
  %2299 = vmatprep.subr.bf16.mxu0 0
  %2300 = vmatpush1.bf16.msra.mxu0 %v2261
  %2301 = vmatprep.subr.bf16.mxu0 0
  %2302 = vmatpush1.bf16.msra.mxu0 %v2262
  %2303 = vmatprep.subr.bf16.mxu0 0
  %2304 = vmatpush1.bf16.msra.mxu0 %v2263
  %2305 = vmatprep.subr.bf16.mxu0 0
  %2306 = vmatpush1.bf16.msra.mxu0 %v2264
  %2307 = vmatprep.subr.bf16.mxu0 0
  %2308 = vmatpush1.bf16.msra.mxu0 %v2265
  %2309 = vmatprep.subr.bf16.mxu0 0
  %2310 = vmatpush1.bf16.msra.mxu0 %v2266
  %2311 = vmatprep.subr.bf16.mxu0 0
  %2312 = vmatpush1.bf16.msra.mxu0 %v2267
  %2313 = vmatprep.subr.bf16.mxu0 0
  %2314 = vmatpush1.bf16.msra.mxu0 %v2268
  %2315 = vmatprep.subr.bf16.mxu0 0
  %2316 = vmatpush1.bf16.msra.mxu0 %v2269
  %2317 = vmatprep.subr.bf16.mxu0 0
  %2318 = vmatpush1.bf16.msra.mxu0 %v2270
  %2319 = vmatprep.mubr.bf16.mxu0 %v2020
  %2320 = vmatmul.mubr.bf16.gmra.mrb[0].mxu0 %v2019
  %v2321 = vpop.f32.mrb[0].mxu0
  %v2322 = vadd.f32 %v2186, %v2321
  %v2323 = vpop.f32.mrb[0].mxu0
  %v2324 = vpop.f32.mrb[0].mxu0
  %v2325 = vpop.f32.mrb[0].mxu0
  %2326 = vdwg.mxu0
  %v2327 = vld [vmem:[%s3 + $0x2a] sm:$0x1]
  %v2329 = vlaneseq
  %v2330 = vshrl.u32 %v2329, 7
  %v2331 = vsub.s32 0, %v2330
  %v2332 = vrot.slane %v2327, %v2331
  %v2334 = vadd.f32 %v2322, %v2332
  %2335 = vst [vmem:[%s4] sm:$0xff] %v2334
  // Predicated region
  $region18: #{push_network_forward.1} parent=0 // pred_check
    _
  $region19: #{push_network_forward.1} parent=0 // pred_check_branch
    %2337 = sbr.rel (0) target = $region21
  $region20: #{push_network_forward.1} parent=0 // pred_region
    _
  $region21: #{push_network_forward.1} parent=0 // pred_fallthru
    _
  // Predicated region
  $region22: #{push_network_forward.1} parent=0 // pred_check
    _
  $region23: #{push_network_forward.1} parent=0 // pred_check_branch
    %2339 = sbr.rel (0) target = $region25
  $region24: #{push_network_forward.1} parent=0 // pred_region
    _
  $region25: #{push_network_forward.1} parent=0 // pred_fallthru
    _

</llo_original>
